<compile_context>
chip_gen: v7x
topology: tpu7x:2x2x1
jax: 0.10.0
libtpu: 0.0.40
codegen_flags: <defaults>
</compile_context>

<pallas_src>
import functools

import jax
import jax.numpy as jnp
import numpy as np
from jax.experimental import pallas as pl
from jax.experimental.pallas import tpu as pltpu


def _assembler_kernel(ids_ref, pair_ref, tok_hbm, special_ref, w_ref, b_ref,
                      pos_ref, out_ref, stream_buf, sem, *, T):
    """One grid step = one batch row.

    ids_ref     : (B, T) int32 in SMEM (scalar prefetch)
    pair_ref    : (1, 2, C) f32   — [example_clip, target_clip] for this row
    tok_hbm     : (V, D) f32      — token-embedding table, left in HBM (pl.ANY)
    special_ref : (2, D) f32      — [start_emb, end_emb] (batch-invariant)
    w_ref       : (C, D) f32      — clip_proj weight, pre-transposed
    b_ref       : (1, D) f32      — clip_proj bias
    pos_ref     : (L, D) f32      — positional-embedding rows 0..L-1
    out_ref     : (1, L, D) f32
    stream_buf  : (L, D) f32 VMEM scratch
    sem         : DMA semaphores, shape (T,)
    """
    b = pl.program_id(0)

    # --- issue one row-gather DMA per prompt token (HBM -> VMEM rows 0..T-1).
    # T is a small compile-time constant, so a static Python loop unrolls fine.
    copies = []
    for t in range(T):
        rid = ids_ref[b, t]
        cp = pltpu.make_async_copy(tok_hbm.at[rid], stream_buf.at[t], sem.at[t])
        cp.start()
        copies.append(cp)

    # --- fused CLIP projection for (example, target): (2, C) @ (C, D) on MXU.
    # Runs while the gather DMAs are in flight.
    x2 = pair_ref[0]                                                 # (2, C)
    proj = jnp.dot(x2, w_ref[...],
                   preferred_element_type=jnp.float32) + b_ref[...]  # (2, D)

    # --- tail rows: [start, example, end, start, target, end] (static offsets).
    # These rows are disjoint from the DMA target rows 0..T-1, so issuing the
    # stores before the waits is safe and keeps the DMAs overlapped.
    stream_buf[pl.ds(T + 0, 1), :] = special_ref[pl.ds(0, 1), :]
    stream_buf[pl.ds(T + 1, 1), :] = proj[0:1, :]
    stream_buf[pl.ds(T + 2, 1), :] = special_ref[pl.ds(1, 1), :]
    stream_buf[pl.ds(T + 3, 1), :] = special_ref[pl.ds(0, 1), :]
    stream_buf[pl.ds(T + 4, 1), :] = proj[1:2, :]
    stream_buf[pl.ds(T + 5, 1), :] = special_ref[pl.ds(1, 1), :]

    # --- wait for all gathers.
    for cp in copies:
        cp.wait()

    # --- add positional embedding and write the whole (L, D) slab in one store.
    out_ref[0] = stream_buf[...] + pos_ref[...]


def clip_prompt_assembler(prompt_ids, example_clip, target_clip, params,
                          start_image_token_id, end_image_token_id):
    """JAX/Pallas equivalent of CLIPPromptAssembler.forward."""
    tok_table = jnp.asarray(params["token_embed"], jnp.float32)     # (V, D)
    w = jnp.asarray(params["clip_proj_w"], jnp.float32)             # (D, C) torch Linear layout
    bias = jnp.asarray(params["clip_proj_b"], jnp.float32)          # (D,)
    pos_table = jnp.asarray(params["pos_embed"], jnp.float32)       # (max_seq_len, D)

    B, T = prompt_ids.shape
    V, D = tok_table.shape
    C = w.shape[1]
    L = T + 6

    w_t = w.T                                                       # (C, D): x @ W^T == x @ w_t
    bias2d = bias.reshape(1, D)
    pos_slice = pos_table[:L]                                       # (L, D)
    # Batch-invariant special-token rows, hoisted out of the kernel.
    special = tok_table[jnp.array([start_image_token_id, end_image_token_id])]  # (2, D)
    # Stack example/target so the kernel does one (2, C) @ (C, D) matmul per row.
    clip_pair = jnp.stack([jnp.asarray(example_clip, jnp.float32),
                           jnp.asarray(target_clip, jnp.float32)], axis=1)      # (B, 2, C)
    # Clamp ids: an OOB id would otherwise become an unchecked OOB DMA read.
    ids = jnp.clip(prompt_ids.astype(jnp.int32), 0, V - 1)

    kernel = functools.partial(_assembler_kernel, T=T)

    return pl.pallas_call(
        kernel,
        out_shape=jax.ShapeDtypeStruct((B, L, D), jnp.float32),
        grid_spec=pltpu.PrefetchScalarGridSpec(
            num_scalar_prefetch=1,                 # prompt ids -> SMEM
            grid=(B,),
            in_specs=[
                pl.BlockSpec((1, 2, C), lambda b, ids: (b, 0, 0)),   # clip pair (per batch row)
                pl.BlockSpec(memory_space=pl.ANY),                   # token table stays in HBM
                pl.BlockSpec((2, D), lambda b, ids: (0, 0)),         # [start, end] embeddings
                pl.BlockSpec((C, D), lambda b, ids: (0, 0)),         # clip proj weight^T
                pl.BlockSpec((1, D), lambda b, ids: (0, 0)),         # clip proj bias
                pl.BlockSpec((L, D), lambda b, ids: (0, 0)),         # positional rows 0..L-1
            ],
            out_specs=pl.BlockSpec((1, L, D), lambda b, ids: (b, 0, 0)),
            scratch_shapes=[
                pltpu.VMEM((L, D), jnp.float32),       # assembled stream
                pltpu.SemaphoreType.DMA((T,)),         # one sem per gathered row
            ],
        ),
        compiler_params=pltpu.CompilerParams(
            dimension_semantics=("parallel",)),        # batch rows split across v7x's 2 TCs
    )(ids, clip_pair, tok_table, special, w_t, bias2d, pos_slice)


def _reference(prompt_ids, ex, tgt, params, sid, eid):
    tok = params["token_embed"]
    w = params["clip_proj_w"]
    b = params["clip_proj_b"]
    pos = params["pos_embed"]
    B, T = prompt_ids.shape
    D = tok.shape[1]
    prompt_emb = tok[prompt_ids]
    start_emb = jnp.broadcast_to(tok[sid], (B, 1, D))
    end_emb = jnp.broadcast_to(tok[eid], (B, 1, D))
    ex_emb = (ex @ w.T + b)[:, None, :]
    tgt_emb = (tgt @ w.T + b)[:, None, :]
    stream = jnp.concatenate(
        [prompt_emb, start_emb, ex_emb, end_emb, start_emb, tgt_emb, end_emb],
        axis=1)
    return stream + pos[: T + 6][None]


if __name__ == "__main__":
    # Small, forward-consistent shapes.
    B, T = 2, 8
    vocab_size, d_model, clip_dim, max_seq_len = 64, 32, 48, 128
    start_image_token_id, end_image_token_id = 61, 62

    key = jax.random.PRNGKey(0)
    k_tok, k_w, k_b, k_pos, k_ids, k_ex, k_tgt = jax.random.split(key, 7)

    params = {
        "token_embed": jax.random.normal(k_tok, (vocab_size, d_model), jnp.float32),
        "clip_proj_w": jax.random.normal(k_w, (d_model, clip_dim), jnp.float32) * 0.05,
        "clip_proj_b": jax.random.normal(k_b, (d_model,), jnp.float32) * 0.05,
        "pos_embed": jax.random.normal(k_pos, (max_seq_len, d_model), jnp.float32),
    }

    prompt_ids = jax.random.randint(k_ids, (B, T), 0, vocab_size, jnp.int32)
    example_clip = jax.random.normal(k_ex, (B, clip_dim), jnp.float32)
    target_clip = jax.random.normal(k_tgt, (B, clip_dim), jnp.float32)

    out = clip_prompt_assembler(prompt_ids, example_clip, target_clip, params,
                                start_image_token_id, end_image_token_id)
    out = jax.block_until_ready(out)

    ref = _reference(prompt_ids, example_clip, target_clip, params,
                     start_image_token_id, end_image_token_id)
    assert out.shape == (B, T + 6, d_model), out.shape
    np.testing.assert_allclose(np.asarray(out), np.asarray(ref),
                               rtol=2e-3, atol=2e-3)
    print("KERNEL_OK")
</pallas_src>

<mosaic_0001>
module attributes {stable_mosaic.version = 11 : i64} {
  func.func @_assembler_kernel(%arg0: i32, %arg1: memref<2x8xi32, #tpu.memory_space<smem>>, %arg2: memref<1x2x48xf32, #tpu.memory_space<vmem>>, %arg3: memref<64x32xf32, #tpu.memory_space<any>>, %arg4: memref<2x32xf32, #tpu.memory_space<vmem>>, %arg5: memref<48x32xf32, #tpu.memory_space<vmem>>, %arg6: memref<1x32xf32, #tpu.memory_space<vmem>>, %arg7: memref<14x32xf32, #tpu.memory_space<vmem>>, %arg8: memref<1x14x32xf32, #tpu.memory_space<vmem>>, %arg9: memref<14x32xf32, #tpu.memory_space<vmem>>, %arg10: memref<8x!tpu.dma_semaphore, #tpu.memory_space<semaphore_mem>>) attributes {dimension_semantics = [#tpu.dimension_semantics<parallel>], iteration_bounds = array<i64: 2>, scalar_prefetch = 1 : i64, scratch_operands = 2 : i64, tpu.core_type = #tpu.core_type<tc>, window_params = [{transform_indices = @transform_0, window_bounds = array<i64: 1, 2, 48>}, {}, {pipeline_mode = #tpu.pipeline_mode<synchronous>, transform_indices = @transform_2, window_bounds = array<i64: 2, 32>}, {pipeline_mode = #tpu.pipeline_mode<synchronous>, transform_indices = @transform_3, window_bounds = array<i64: 48, 32>}, {pipeline_mode = #tpu.pipeline_mode<synchronous>, transform_indices = @transform_4, window_bounds = array<i64: 1, 32>}, {pipeline_mode = #tpu.pipeline_mode<synchronous>, transform_indices = @transform_5, window_bounds = array<i64: 14, 32>}, {transform_indices = @transform_6, window_bounds = array<i64: 1, 14, 32>}]} {
    %0 = arith.index_cast %arg0 : i32 to index
    %c0 = arith.constant 0 : index
    %1 = memref.load %arg1[%0, %c0] : memref<2x8xi32, #tpu.memory_space<smem>>
    %c0_i32 = arith.constant 0 : i32
    %c0_i32_0 = arith.constant 0 : i32
    %c0_i32_1 = arith.constant 0 : i32
    %2 = tpu.memref_slice %arg3[%1, %c0_i32_1] : memref<64x32xf32, #tpu.memory_space<any>> -> memref<1x32xf32, #tpu.memory_space<any>>
    %3 = tpu.memref_squeeze %2 : memref<1x32xf32, #tpu.memory_space<any>> -> memref<32xf32, #tpu.memory_space<any>>
    %c0_i32_2 = arith.constant 0 : i32
    %4 = tpu.memref_slice %arg9[%c0_i32, %c0_i32_2] : memref<14x32xf32, #tpu.memory_space<vmem>> -> memref<1x32xf32, #tpu.memory_space<vmem>>
    %5 = tpu.memref_squeeze %4 : memref<1x32xf32, #tpu.memory_space<vmem>> -> memref<32xf32, #tpu.memory_space<vmem>>
    %6 = tpu.memref_slice %arg10[%c0_i32_0] : memref<8x!tpu.dma_semaphore, #tpu.memory_space<semaphore_mem>> -> memref<1x!tpu.dma_semaphore, #tpu.memory_space<semaphore_mem>>
    %7 = tpu.memref_squeeze %6 : memref<1x!tpu.dma_semaphore, #tpu.memory_space<semaphore_mem>> -> memref<!tpu.dma_semaphore, #tpu.memory_space<semaphore_mem>>
    tpu.enqueue_dma source(%3 : memref<32xf32, #tpu.memory_space<any>>) target(%5 : memref<32xf32, #tpu.memory_space<vmem>>) target_semaphore(%7 : memref<!tpu.dma_semaphore, #tpu.memory_space<semaphore_mem>>)
    %8 = arith.index_cast %arg0 : i32 to index
    %c1 = arith.constant 1 : index
    %9 = memref.load %arg1[%8, %c1] : memref<2x8xi32, #tpu.memory_space<smem>>
    %c1_i32 = arith.constant 1 : i32
    %c1_i32_3 = arith.constant 1 : i32
    %c0_i32_4 = arith.constant 0 : i32
    %10 = tpu.memref_slice %arg3[%9, %c0_i32_4] : memref<64x32xf32, #tpu.memory_space<any>> -> memref<1x32xf32, #tpu.memory_space<any>>
    %11 = tpu.memref_squeeze %10 : memref<1x32xf32, #tpu.memory_space<any>> -> memref<32xf32, #tpu.memory_space<any>>
    %c0_i32_5 = arith.constant 0 : i32
    %12 = tpu.memref_slice %arg9[%c1_i32, %c0_i32_5] : memref<14x32xf32, #tpu.memory_space<vmem>> -> memref<1x32xf32, #tpu.memory_space<vmem>>
    %13 = tpu.memref_squeeze %12 : memref<1x32xf32, #tpu.memory_space<vmem>> -> memref<32xf32, #tpu.memory_space<vmem>>
    %14 = tpu.memref_slice %arg10[%c1_i32_3] : memref<8x!tpu.dma_semaphore, #tpu.memory_space<semaphore_mem>> -> memref<1x!tpu.dma_semaphore, #tpu.memory_space<semaphore_mem>>
    %15 = tpu.memref_squeeze %14 : memref<1x!tpu.dma_semaphore, #tpu.memory_space<semaphore_mem>> -> memref<!tpu.dma_semaphore, #tpu.memory_space<semaphore_mem>>
    tpu.enqueue_dma source(%11 : memref<32xf32, #tpu.memory_space<any>>) target(%13 : memref<32xf32, #tpu.memory_space<vmem>>) target_semaphore(%15 : memref<!tpu.dma_semaphore, #tpu.memory_space<semaphore_mem>>)
    %16 = arith.index_cast %arg0 : i32 to index
    %c2 = arith.constant 2 : index
    %17 = memref.load %arg1[%16, %c2] : memref<2x8xi32, #tpu.memory_space<smem>>
    %c2_i32 = arith.constant 2 : i32
    %c2_i32_6 = arith.constant 2 : i32
    %c0_i32_7 = arith.constant 0 : i32
    %18 = tpu.memref_slice %arg3[%17, %c0_i32_7] : memref<64x32xf32, #tpu.memory_space<any>> -> memref<1x32xf32, #tpu.memory_space<any>>
    %19 = tpu.memref_squeeze %18 : memref<1x32xf32, #tpu.memory_space<any>> -> memref<32xf32, #tpu.memory_space<any>>
    %c0_i32_8 = arith.constant 0 : i32
    %20 = tpu.memref_slice %arg9[%c2_i32, %c0_i32_8] : memref<14x32xf32, #tpu.memory_space<vmem>> -> memref<1x32xf32, #tpu.memory_space<vmem>>
    %21 = tpu.memref_squeeze %20 : memref<1x32xf32, #tpu.memory_space<vmem>> -> memref<32xf32, #tpu.memory_space<vmem>>
    %22 = tpu.memref_slice %arg10[%c2_i32_6] : memref<8x!tpu.dma_semaphore, #tpu.memory_space<semaphore_mem>> -> memref<1x!tpu.dma_semaphore, #tpu.memory_space<semaphore_mem>>
    %23 = tpu.memref_squeeze %22 : memref<1x!tpu.dma_semaphore, #tpu.memory_space<semaphore_mem>> -> memref<!tpu.dma_semaphore, #tpu.memory_space<semaphore_mem>>
    tpu.enqueue_dma source(%19 : memref<32xf32, #tpu.memory_space<any>>) target(%21 : memref<32xf32, #tpu.memory_space<vmem>>) target_semaphore(%23 : memref<!tpu.dma_semaphore, #tpu.memory_space<semaphore_mem>>)
    %24 = arith.index_cast %arg0 : i32 to index
    %c3 = arith.constant 3 : index
    %25 = memref.load %arg1[%24, %c3] : memref<2x8xi32, #tpu.memory_space<smem>>
    %c3_i32 = arith.constant 3 : i32
    %c3_i32_9 = arith.constant 3 : i32
    %c0_i32_10 = arith.constant 0 : i32
    %26 = tpu.memref_slice %arg3[%25, %c0_i32_10] : memref<64x32xf32, #tpu.memory_space<any>> -> memref<1x32xf32, #tpu.memory_space<any>>
    %27 = tpu.memref_squeeze %26 : memref<1x32xf32, #tpu.memory_space<any>> -> memref<32xf32, #tpu.memory_space<any>>
    %c0_i32_11 = arith.constant 0 : i32
    %28 = tpu.memref_slice %arg9[%c3_i32, %c0_i32_11] : memref<14x32xf32, #tpu.memory_space<vmem>> -> memref<1x32xf32, #tpu.memory_space<vmem>>
    %29 = tpu.memref_squeeze %28 : memref<1x32xf32, #tpu.memory_space<vmem>> -> memref<32xf32, #tpu.memory_space<vmem>>
    %30 = tpu.memref_slice %arg10[%c3_i32_9] : memref<8x!tpu.dma_semaphore, #tpu.memory_space<semaphore_mem>> -> memref<1x!tpu.dma_semaphore, #tpu.memory_space<semaphore_mem>>
    %31 = tpu.memref_squeeze %30 : memref<1x!tpu.dma_semaphore, #tpu.memory_space<semaphore_mem>> -> memref<!tpu.dma_semaphore, #tpu.memory_space<semaphore_mem>>
    tpu.enqueue_dma source(%27 : memref<32xf32, #tpu.memory_space<any>>) target(%29 : memref<32xf32, #tpu.memory_space<vmem>>) target_semaphore(%31 : memref<!tpu.dma_semaphore, #tpu.memory_space<semaphore_mem>>)
    %32 = arith.index_cast %arg0 : i32 to index
    %c4 = arith.constant 4 : index
    %33 = memref.load %arg1[%32, %c4] : memref<2x8xi32, #tpu.memory_space<smem>>
    %c4_i32 = arith.constant 4 : i32
    %c4_i32_12 = arith.constant 4 : i32
    %c0_i32_13 = arith.constant 0 : i32
    %34 = tpu.memref_slice %arg3[%33, %c0_i32_13] : memref<64x32xf32, #tpu.memory_space<any>> -> memref<1x32xf32, #tpu.memory_space<any>>
    %35 = tpu.memref_squeeze %34 : memref<1x32xf32, #tpu.memory_space<any>> -> memref<32xf32, #tpu.memory_space<any>>
    %c0_i32_14 = arith.constant 0 : i32
    %36 = tpu.memref_slice %arg9[%c4_i32, %c0_i32_14] : memref<14x32xf32, #tpu.memory_space<vmem>> -> memref<1x32xf32, #tpu.memory_space<vmem>>
    %37 = tpu.memref_squeeze %36 : memref<1x32xf32, #tpu.memory_space<vmem>> -> memref<32xf32, #tpu.memory_space<vmem>>
    %38 = tpu.memref_slice %arg10[%c4_i32_12] : memref<8x!tpu.dma_semaphore, #tpu.memory_space<semaphore_mem>> -> memref<1x!tpu.dma_semaphore, #tpu.memory_space<semaphore_mem>>
    %39 = tpu.memref_squeeze %38 : memref<1x!tpu.dma_semaphore, #tpu.memory_space<semaphore_mem>> -> memref<!tpu.dma_semaphore, #tpu.memory_space<semaphore_mem>>
    tpu.enqueue_dma source(%35 : memref<32xf32, #tpu.memory_space<any>>) target(%37 : memref<32xf32, #tpu.memory_space<vmem>>) target_semaphore(%39 : memref<!tpu.dma_semaphore, #tpu.memory_space<semaphore_mem>>)
    %40 = arith.index_cast %arg0 : i32 to index
    %c5 = arith.constant 5 : index
    %41 = memref.load %arg1[%40, %c5] : memref<2x8xi32, #tpu.memory_space<smem>>
    %c5_i32 = arith.constant 5 : i32
    %c5_i32_15 = arith.constant 5 : i32
    %c0_i32_16 = arith.constant 0 : i32
    %42 = tpu.memref_slice %arg3[%41, %c0_i32_16] : memref<64x32xf32, #tpu.memory_space<any>> -> memref<1x32xf32, #tpu.memory_space<any>>
    %43 = tpu.memref_squeeze %42 : memref<1x32xf32, #tpu.memory_space<any>> -> memref<32xf32, #tpu.memory_space<any>>
    %c0_i32_17 = arith.constant 0 : i32
    %44 = tpu.memref_slice %arg9[%c5_i32, %c0_i32_17] : memref<14x32xf32, #tpu.memory_space<vmem>> -> memref<1x32xf32, #tpu.memory_space<vmem>>
    %45 = tpu.memref_squeeze %44 : memref<1x32xf32, #tpu.memory_space<vmem>> -> memref<32xf32, #tpu.memory_space<vmem>>
    %46 = tpu.memref_slice %arg10[%c5_i32_15] : memref<8x!tpu.dma_semaphore, #tpu.memory_space<semaphore_mem>> -> memref<1x!tpu.dma_semaphore, #tpu.memory_space<semaphore_mem>>
    %47 = tpu.memref_squeeze %46 : memref<1x!tpu.dma_semaphore, #tpu.memory_space<semaphore_mem>> -> memref<!tpu.dma_semaphore, #tpu.memory_space<semaphore_mem>>
    tpu.enqueue_dma source(%43 : memref<32xf32, #tpu.memory_space<any>>) target(%45 : memref<32xf32, #tpu.memory_space<vmem>>) target_semaphore(%47 : memref<!tpu.dma_semaphore, #tpu.memory_space<semaphore_mem>>)
    %48 = arith.index_cast %arg0 : i32 to index
    %c6 = arith.constant 6 : index
    %49 = memref.load %arg1[%48, %c6] : memref<2x8xi32, #tpu.memory_space<smem>>
    %c6_i32 = arith.constant 6 : i32
    %c6_i32_18 = arith.constant 6 : i32
    %c0_i32_19 = arith.constant 0 : i32
    %50 = tpu.memref_slice %arg3[%49, %c0_i32_19] : memref<64x32xf32, #tpu.memory_space<any>> -> memref<1x32xf32, #tpu.memory_space<any>>
    %51 = tpu.memref_squeeze %50 : memref<1x32xf32, #tpu.memory_space<any>> -> memref<32xf32, #tpu.memory_space<any>>
    %c0_i32_20 = arith.constant 0 : i32
    %52 = tpu.memref_slice %arg9[%c6_i32, %c0_i32_20] : memref<14x32xf32, #tpu.memory_space<vmem>> -> memref<1x32xf32, #tpu.memory_space<vmem>>
    %53 = tpu.memref_squeeze %52 : memref<1x32xf32, #tpu.memory_space<vmem>> -> memref<32xf32, #tpu.memory_space<vmem>>
    %54 = tpu.memref_slice %arg10[%c6_i32_18] : memref<8x!tpu.dma_semaphore, #tpu.memory_space<semaphore_mem>> -> memref<1x!tpu.dma_semaphore, #tpu.memory_space<semaphore_mem>>
    %55 = tpu.memref_squeeze %54 : memref<1x!tpu.dma_semaphore, #tpu.memory_space<semaphore_mem>> -> memref<!tpu.dma_semaphore, #tpu.memory_space<semaphore_mem>>
    tpu.enqueue_dma source(%51 : memref<32xf32, #tpu.memory_space<any>>) target(%53 : memref<32xf32, #tpu.memory_space<vmem>>) target_semaphore(%55 : memref<!tpu.dma_semaphore, #tpu.memory_space<semaphore_mem>>)
    %56 = arith.index_cast %arg0 : i32 to index
    %c7 = arith.constant 7 : index
    %57 = memref.load %arg1[%56, %c7] : memref<2x8xi32, #tpu.memory_space<smem>>
    %c7_i32 = arith.constant 7 : i32
    %c7_i32_21 = arith.constant 7 : i32
    %c0_i32_22 = arith.constant 0 : i32
    %58 = tpu.memref_slice %arg3[%57, %c0_i32_22] : memref<64x32xf32, #tpu.memory_space<any>> -> memref<1x32xf32, #tpu.memory_space<any>>
    %59 = tpu.memref_squeeze %58 : memref<1x32xf32, #tpu.memory_space<any>> -> memref<32xf32, #tpu.memory_space<any>>
    %c0_i32_23 = arith.constant 0 : i32
    %60 = tpu.memref_slice %arg9[%c7_i32, %c0_i32_23] : memref<14x32xf32, #tpu.memory_space<vmem>> -> memref<1x32xf32, #tpu.memory_space<vmem>>
    %61 = tpu.memref_squeeze %60 : memref<1x32xf32, #tpu.memory_space<vmem>> -> memref<32xf32, #tpu.memory_space<vmem>>
    %62 = tpu.memref_slice %arg10[%c7_i32_21] : memref<8x!tpu.dma_semaphore, #tpu.memory_space<semaphore_mem>> -> memref<1x!tpu.dma_semaphore, #tpu.memory_space<semaphore_mem>>
    %63 = tpu.memref_squeeze %62 : memref<1x!tpu.dma_semaphore, #tpu.memory_space<semaphore_mem>> -> memref<!tpu.dma_semaphore, #tpu.memory_space<semaphore_mem>>
    tpu.enqueue_dma source(%59 : memref<32xf32, #tpu.memory_space<any>>) target(%61 : memref<32xf32, #tpu.memory_space<vmem>>) target_semaphore(%63 : memref<!tpu.dma_semaphore, #tpu.memory_space<semaphore_mem>>)
    %c0_24 = arith.constant 0 : index
    %c0_25 = arith.constant 0 : index
    %c0_26 = arith.constant 0 : index
    %64 = vector.load %arg2[%c0_24, %c0_25, %c0_26] : memref<1x2x48xf32, #tpu.memory_space<vmem>>, vector<1x2x48xf32>
    %65 = vector.shape_cast %64 : vector<1x2x48xf32> to vector<2x48xf32>
    %c0_27 = arith.constant 0 : index
    %c0_28 = arith.constant 0 : index
    %66 = vector.load %arg5[%c0_27, %c0_28] : memref<48x32xf32, #tpu.memory_space<vmem>>, vector<48x32xf32>
    %cst = arith.constant dense<0.000000e+00> : vector<2x32xf32>
    %67 = tpu.matmul %65, %66, %cst {dimension_numbers = #tpu.dot_dimension_numbers<[1], [0], [0], [1], [0, 0, 1, 1], [], []>} : vector<2x48xf32>, vector<48x32xf32>, vector<2x32xf32> -> vector<2x32xf32>
    %c0_29 = arith.constant 0 : index
    %c0_30 = arith.constant 0 : index
    %68 = vector.load %arg6[%c0_29, %c0_30] : memref<1x32xf32, #tpu.memory_space<vmem>>, vector<1x32xf32>
    %69 = vector.broadcast %68 : vector<1x32xf32> to vector<2x32xf32>
    %70 = arith.addf %67, %69 : vector<2x32xf32>
    %c0_31 = arith.constant 0 : index
    %c0_32 = arith.constant 0 : index
    %71 = vector.load %arg4[%c0_31, %c0_32] : memref<2x32xf32, #tpu.memory_space<vmem>>, vector<1x32xf32>
    %c8 = arith.constant 8 : index
    %c0_33 = arith.constant 0 : index
    %72 = vector.load %arg9[%c8, %c0_33] : memref<14x32xf32, #tpu.memory_space<vmem>>, vector<1x32xf32>
    tpu.vector_store %arg9[%c8, %c0_33], %71 {strides = array<i32>} : memref<14x32xf32, #tpu.memory_space<vmem>>, vector<1x32xf32>,
    %73 = vector.extract_strided_slice %70 {offsets = [0, 0], sizes = [1, 32], strides = [1, 1]} : vector<2x32xf32> to vector<1x32xf32>
    %c9 = arith.constant 9 : index
    %c0_34 = arith.constant 0 : index
    %74 = vector.load %arg9[%c9, %c0_34] : memref<14x32xf32, #tpu.memory_space<vmem>>, vector<1x32xf32>
    tpu.vector_store %arg9[%c9, %c0_34], %73 {strides = array<i32>} : memref<14x32xf32, #tpu.memory_space<vmem>>, vector<1x32xf32>,
    %c1_35 = arith.constant 1 : index
    %c0_36 = arith.constant 0 : index
    %75 = vector.load %arg4[%c1_35, %c0_36] : memref<2x32xf32, #tpu.memory_space<vmem>>, vector<1x32xf32>
    %c10 = arith.constant 10 : index
    %c0_37 = arith.constant 0 : index
    %76 = vector.load %arg9[%c10, %c0_37] : memref<14x32xf32, #tpu.memory_space<vmem>>, vector<1x32xf32>
    tpu.vector_store %arg9[%c10, %c0_37], %75 {strides = array<i32>} : memref<14x32xf32, #tpu.memory_space<vmem>>, vector<1x32xf32>,
    %c0_38 = arith.constant 0 : index
    %c0_39 = arith.constant 0 : index
    %77 = vector.load %arg4[%c0_38, %c0_39] : memref<2x32xf32, #tpu.memory_space<vmem>>, vector<1x32xf32>
    %c11 = arith.constant 11 : index
    %c0_40 = arith.constant 0 : index
    %78 = vector.load %arg9[%c11, %c0_40] : memref<14x32xf32, #tpu.memory_space<vmem>>, vector<1x32xf32>
    tpu.vector_store %arg9[%c11, %c0_40], %77 {strides = array<i32>} : memref<14x32xf32, #tpu.memory_space<vmem>>, vector<1x32xf32>,
    %79 = vector.extract_strided_slice %70 {offsets = [1, 0], sizes = [1, 32], strides = [1, 1]} : vector<2x32xf32> to vector<1x32xf32>
    %c12 = arith.constant 12 : index
    %c0_41 = arith.constant 0 : index
    %80 = vector.load %arg9[%c12, %c0_41] : memref<14x32xf32, #tpu.memory_space<vmem>>, vector<1x32xf32>
    tpu.vector_store %arg9[%c12, %c0_41], %79 {strides = array<i32>} : memref<14x32xf32, #tpu.memory_space<vmem>>, vector<1x32xf32>,
    %c1_42 = arith.constant 1 : index
    %c0_43 = arith.constant 0 : index
    %81 = vector.load %arg4[%c1_42, %c0_43] : memref<2x32xf32, #tpu.memory_space<vmem>>, vector<1x32xf32>
    %c13 = arith.constant 13 : index
    %c0_44 = arith.constant 0 : index
    %82 = vector.load %arg9[%c13, %c0_44] : memref<14x32xf32, #tpu.memory_space<vmem>>, vector<1x32xf32>
    tpu.vector_store %arg9[%c13, %c0_44], %81 {strides = array<i32>} : memref<14x32xf32, #tpu.memory_space<vmem>>, vector<1x32xf32>,
    %c0_i32_45 = arith.constant 0 : i32
    %c0_i32_46 = arith.constant 0 : i32
    %c0_i32_47 = arith.constant 0 : i32
    %83 = tpu.memref_slice %arg3[%1, %c0_i32_47] : memref<64x32xf32, #tpu.memory_space<any>> -> memref<1x32xf32, #tpu.memory_space<any>>
    %84 = tpu.memref_squeeze %83 : memref<1x32xf32, #tpu.memory_space<any>> -> memref<32xf32, #tpu.memory_space<any>>
    %c0_i32_48 = arith.constant 0 : i32
    %85 = tpu.memref_slice %arg9[%c0_i32_45, %c0_i32_48] : memref<14x32xf32, #tpu.memory_space<vmem>> -> memref<1x32xf32, #tpu.memory_space<vmem>>
    %86 = tpu.memref_squeeze %85 : memref<1x32xf32, #tpu.memory_space<vmem>> -> memref<32xf32, #tpu.memory_space<vmem>>
    %87 = tpu.memref_slice %arg10[%c0_i32_46] : memref<8x!tpu.dma_semaphore, #tpu.memory_space<semaphore_mem>> -> memref<1x!tpu.dma_semaphore, #tpu.memory_space<semaphore_mem>>
    %88 = tpu.memref_squeeze %87 : memref<1x!tpu.dma_semaphore, #tpu.memory_space<semaphore_mem>> -> memref<!tpu.dma_semaphore, #tpu.memory_space<semaphore_mem>>
    tpu.wait_dma2 semaphore(%88 : memref<!tpu.dma_semaphore, #tpu.memory_space<semaphore_mem>>) src(%84 : memref<32xf32, #tpu.memory_space<any>>) dst(%86 : memref<32xf32, #tpu.memory_space<vmem>>)
    %c1_i32_49 = arith.constant 1 : i32
    %c1_i32_50 = arith.constant 1 : i32
    %c0_i32_51 = arith.constant 0 : i32
    %89 = tpu.memref_slice %arg3[%9, %c0_i32_51] : memref<64x32xf32, #tpu.memory_space<any>> -> memref<1x32xf32, #tpu.memory_space<any>>
    %90 = tpu.memref_squeeze %89 : memref<1x32xf32, #tpu.memory_space<any>> -> memref<32xf32, #tpu.memory_space<any>>
    %c0_i32_52 = arith.constant 0 : i32
    %91 = tpu.memref_slice %arg9[%c1_i32_49, %c0_i32_52] : memref<14x32xf32, #tpu.memory_space<vmem>> -> memref<1x32xf32, #tpu.memory_space<vmem>>
    %92 = tpu.memref_squeeze %91 : memref<1x32xf32, #tpu.memory_space<vmem>> -> memref<32xf32, #tpu.memory_space<vmem>>
    %93 = tpu.memref_slice %arg10[%c1_i32_50] : memref<8x!tpu.dma_semaphore, #tpu.memory_space<semaphore_mem>> -> memref<1x!tpu.dma_semaphore, #tpu.memory_space<semaphore_mem>>
    %94 = tpu.memref_squeeze %93 : memref<1x!tpu.dma_semaphore, #tpu.memory_space<semaphore_mem>> -> memref<!tpu.dma_semaphore, #tpu.memory_space<semaphore_mem>>
    tpu.wait_dma2 semaphore(%94 : memref<!tpu.dma_semaphore, #tpu.memory_space<semaphore_mem>>) src(%90 : memref<32xf32, #tpu.memory_space<any>>) dst(%92 : memref<32xf32, #tpu.memory_space<vmem>>)
    %c2_i32_53 = arith.constant 2 : i32
    %c2_i32_54 = arith.constant 2 : i32
    %c0_i32_55 = arith.constant 0 : i32
    %95 = tpu.memref_slice %arg3[%17, %c0_i32_55] : memref<64x32xf32, #tpu.memory_space<any>> -> memref<1x32xf32, #tpu.memory_space<any>>
    %96 = tpu.memref_squeeze %95 : memref<1x32xf32, #tpu.memory_space<any>> -> memref<32xf32, #tpu.memory_space<any>>
    %c0_i32_56 = arith.constant 0 : i32
    %97 = tpu.memref_slice %arg9[%c2_i32_53, %c0_i32_56] : memref<14x32xf32, #tpu.memory_space<vmem>> -> memref<1x32xf32, #tpu.memory_space<vmem>>
    %98 = tpu.memref_squeeze %97 : memref<1x32xf32, #tpu.memory_space<vmem>> -> memref<32xf32, #tpu.memory_space<vmem>>
    %99 = tpu.memref_slice %arg10[%c2_i32_54] : memref<8x!tpu.dma_semaphore, #tpu.memory_space<semaphore_mem>> -> memref<1x!tpu.dma_semaphore, #tpu.memory_space<semaphore_mem>>
    %100 = tpu.memref_squeeze %99 : memref<1x!tpu.dma_semaphore, #tpu.memory_space<semaphore_mem>> -> memref<!tpu.dma_semaphore, #tpu.memory_space<semaphore_mem>>
    tpu.wait_dma2 semaphore(%100 : memref<!tpu.dma_semaphore, #tpu.memory_space<semaphore_mem>>) src(%96 : memref<32xf32, #tpu.memory_space<any>>) dst(%98 : memref<32xf32, #tpu.memory_space<vmem>>)
    %c3_i32_57 = arith.constant 3 : i32
    %c3_i32_58 = arith.constant 3 : i32
    %c0_i32_59 = arith.constant 0 : i32
    %101 = tpu.memref_slice %arg3[%25, %c0_i32_59] : memref<64x32xf32, #tpu.memory_space<any>> -> memref<1x32xf32, #tpu.memory_space<any>>
    %102 = tpu.memref_squeeze %101 : memref<1x32xf32, #tpu.memory_space<any>> -> memref<32xf32, #tpu.memory_space<any>>
    %c0_i32_60 = arith.constant 0 : i32
    %103 = tpu.memref_slice %arg9[%c3_i32_57, %c0_i32_60] : memref<14x32xf32, #tpu.memory_space<vmem>> -> memref<1x32xf32, #tpu.memory_space<vmem>>
    %104 = tpu.memref_squeeze %103 : memref<1x32xf32, #tpu.memory_space<vmem>> -> memref<32xf32, #tpu.memory_space<vmem>>
    %105 = tpu.memref_slice %arg10[%c3_i32_58] : memref<8x!tpu.dma_semaphore, #tpu.memory_space<semaphore_mem>> -> memref<1x!tpu.dma_semaphore, #tpu.memory_space<semaphore_mem>>
    %106 = tpu.memref_squeeze %105 : memref<1x!tpu.dma_semaphore, #tpu.memory_space<semaphore_mem>> -> memref<!tpu.dma_semaphore, #tpu.memory_space<semaphore_mem>>
    tpu.wait_dma2 semaphore(%106 : memref<!tpu.dma_semaphore, #tpu.memory_space<semaphore_mem>>) src(%102 : memref<32xf32, #tpu.memory_space<any>>) dst(%104 : memref<32xf32, #tpu.memory_space<vmem>>)
    %c4_i32_61 = arith.constant 4 : i32
    %c4_i32_62 = arith.constant 4 : i32
    %c0_i32_63 = arith.constant 0 : i32
    %107 = tpu.memref_slice %arg3[%33, %c0_i32_63] : memref<64x32xf32, #tpu.memory_space<any>> -> memref<1x32xf32, #tpu.memory_space<any>>
    %108 = tpu.memref_squeeze %107 : memref<1x32xf32, #tpu.memory_space<any>> -> memref<32xf32, #tpu.memory_space<any>>
    %c0_i32_64 = arith.constant 0 : i32
    %109 = tpu.memref_slice %arg9[%c4_i32_61, %c0_i32_64] : memref<14x32xf32, #tpu.memory_space<vmem>> -> memref<1x32xf32, #tpu.memory_space<vmem>>
    %110 = tpu.memref_squeeze %109 : memref<1x32xf32, #tpu.memory_space<vmem>> -> memref<32xf32, #tpu.memory_space<vmem>>
    %111 = tpu.memref_slice %arg10[%c4_i32_62] : memref<8x!tpu.dma_semaphore, #tpu.memory_space<semaphore_mem>> -> memref<1x!tpu.dma_semaphore, #tpu.memory_space<semaphore_mem>>
    %112 = tpu.memref_squeeze %111 : memref<1x!tpu.dma_semaphore, #tpu.memory_space<semaphore_mem>> -> memref<!tpu.dma_semaphore, #tpu.memory_space<semaphore_mem>>
    tpu.wait_dma2 semaphore(%112 : memref<!tpu.dma_semaphore, #tpu.memory_space<semaphore_mem>>) src(%108 : memref<32xf32, #tpu.memory_space<any>>) dst(%110 : memref<32xf32, #tpu.memory_space<vmem>>)
    %c5_i32_65 = arith.constant 5 : i32
    %c5_i32_66 = arith.constant 5 : i32
    %c0_i32_67 = arith.constant 0 : i32
    %113 = tpu.memref_slice %arg3[%41, %c0_i32_67] : memref<64x32xf32, #tpu.memory_space<any>> -> memref<1x32xf32, #tpu.memory_space<any>>
    %114 = tpu.memref_squeeze %113 : memref<1x32xf32, #tpu.memory_space<any>> -> memref<32xf32, #tpu.memory_space<any>>
    %c0_i32_68 = arith.constant 0 : i32
    %115 = tpu.memref_slice %arg9[%c5_i32_65, %c0_i32_68] : memref<14x32xf32, #tpu.memory_space<vmem>> -> memref<1x32xf32, #tpu.memory_space<vmem>>
    %116 = tpu.memref_squeeze %115 : memref<1x32xf32, #tpu.memory_space<vmem>> -> memref<32xf32, #tpu.memory_space<vmem>>
    %117 = tpu.memref_slice %arg10[%c5_i32_66] : memref<8x!tpu.dma_semaphore, #tpu.memory_space<semaphore_mem>> -> memref<1x!tpu.dma_semaphore, #tpu.memory_space<semaphore_mem>>
    %118 = tpu.memref_squeeze %117 : memref<1x!tpu.dma_semaphore, #tpu.memory_space<semaphore_mem>> -> memref<!tpu.dma_semaphore, #tpu.memory_space<semaphore_mem>>
    tpu.wait_dma2 semaphore(%118 : memref<!tpu.dma_semaphore, #tpu.memory_space<semaphore_mem>>) src(%114 : memref<32xf32, #tpu.memory_space<any>>) dst(%116 : memref<32xf32, #tpu.memory_space<vmem>>)
    %c6_i32_69 = arith.constant 6 : i32
    %c6_i32_70 = arith.constant 6 : i32
    %c0_i32_71 = arith.constant 0 : i32
    %119 = tpu.memref_slice %arg3[%49, %c0_i32_71] : memref<64x32xf32, #tpu.memory_space<any>> -> memref<1x32xf32, #tpu.memory_space<any>>
    %120 = tpu.memref_squeeze %119 : memref<1x32xf32, #tpu.memory_space<any>> -> memref<32xf32, #tpu.memory_space<any>>
    %c0_i32_72 = arith.constant 0 : i32
    %121 = tpu.memref_slice %arg9[%c6_i32_69, %c0_i32_72] : memref<14x32xf32, #tpu.memory_space<vmem>> -> memref<1x32xf32, #tpu.memory_space<vmem>>
    %122 = tpu.memref_squeeze %121 : memref<1x32xf32, #tpu.memory_space<vmem>> -> memref<32xf32, #tpu.memory_space<vmem>>
    %123 = tpu.memref_slice %arg10[%c6_i32_70] : memref<8x!tpu.dma_semaphore, #tpu.memory_space<semaphore_mem>> -> memref<1x!tpu.dma_semaphore, #tpu.memory_space<semaphore_mem>>
    %124 = tpu.memref_squeeze %123 : memref<1x!tpu.dma_semaphore, #tpu.memory_space<semaphore_mem>> -> memref<!tpu.dma_semaphore, #tpu.memory_space<semaphore_mem>>
    tpu.wait_dma2 semaphore(%124 : memref<!tpu.dma_semaphore, #tpu.memory_space<semaphore_mem>>) src(%120 : memref<32xf32, #tpu.memory_space<any>>) dst(%122 : memref<32xf32, #tpu.memory_space<vmem>>)
    %c7_i32_73 = arith.constant 7 : i32
    %c7_i32_74 = arith.constant 7 : i32
    %c0_i32_75 = arith.constant 0 : i32
    %125 = tpu.memref_slice %arg3[%57, %c0_i32_75] : memref<64x32xf32, #tpu.memory_space<any>> -> memref<1x32xf32, #tpu.memory_space<any>>
    %126 = tpu.memref_squeeze %125 : memref<1x32xf32, #tpu.memory_space<any>> -> memref<32xf32, #tpu.memory_space<any>>
    %c0_i32_76 = arith.constant 0 : i32
    %127 = tpu.memref_slice %arg9[%c7_i32_73, %c0_i32_76] : memref<14x32xf32, #tpu.memory_space<vmem>> -> memref<1x32xf32, #tpu.memory_space<vmem>>
    %128 = tpu.memref_squeeze %127 : memref<1x32xf32, #tpu.memory_space<vmem>> -> memref<32xf32, #tpu.memory_space<vmem>>
    %129 = tpu.memref_slice %arg10[%c7_i32_74] : memref<8x!tpu.dma_semaphore, #tpu.memory_space<semaphore_mem>> -> memref<1x!tpu.dma_semaphore, #tpu.memory_space<semaphore_mem>>
    %130 = tpu.memref_squeeze %129 : memref<1x!tpu.dma_semaphore, #tpu.memory_space<semaphore_mem>> -> memref<!tpu.dma_semaphore, #tpu.memory_space<semaphore_mem>>
    tpu.wait_dma2 semaphore(%130 : memref<!tpu.dma_semaphore, #tpu.memory_space<semaphore_mem>>) src(%126 : memref<32xf32, #tpu.memory_space<any>>) dst(%128 : memref<32xf32, #tpu.memory_space<vmem>>)
    %c0_77 = arith.constant 0 : index
    %c0_78 = arith.constant 0 : index
    %131 = vector.load %arg9[%c0_77, %c0_78] : memref<14x32xf32, #tpu.memory_space<vmem>>, vector<14x32xf32>
    %c0_79 = arith.constant 0 : index
    %c0_80 = arith.constant 0 : index
    %132 = vector.load %arg7[%c0_79, %c0_80] : memref<14x32xf32, #tpu.memory_space<vmem>>, vector<14x32xf32>
    %133 = arith.addf %131, %132 : vector<14x32xf32>
    %c0_81 = arith.constant 0 : index
    %c0_82 = arith.constant 0 : index
    %c0_83 = arith.constant 0 : index
    %134 = vector.load %arg8[%c0_81, %c0_82, %c0_83] : memref<1x14x32xf32, #tpu.memory_space<vmem>>, vector<1x14x32xf32>
    %135 = vector.shape_cast %134 : vector<1x14x32xf32> to vector<14x32xf32>
    %136 = vector.shape_cast %133 : vector<14x32xf32> to vector<1x14x32xf32>
    tpu.vector_store %arg8[%c0_81, %c0_82, %c0_83], %136 {strides = array<i32>} : memref<1x14x32xf32, #tpu.memory_space<vmem>>, vector<1x14x32xf32>,
    return
  }
  func.func @transform_0(%arg0: i32, %arg1: memref<2x8xi32, #tpu.memory_space<smem>>) -> (i32, i32, i32) {
    %c0_i32 = arith.constant 0 : i32
    %c0_i32_0 = arith.constant 0 : i32
    %c0_i32_1 = arith.constant 0 : i32
    return %arg0, %c0_i32, %c0_i32_0 : i32, i32, i32
  }
  func.func @transform_2(%arg0: i32, %arg1: memref<2x8xi32, #tpu.memory_space<smem>>) -> (i32, i32) {
    %c0_i32 = arith.constant 0 : i32
    %c0_i32_0 = arith.constant 0 : i32
    %c0_i32_1 = arith.constant 0 : i32
    return %c0_i32, %c0_i32_0 : i32, i32
  }
  func.func @transform_3(%arg0: i32, %arg1: memref<2x8xi32, #tpu.memory_space<smem>>) -> (i32, i32) {
    %c0_i32 = arith.constant 0 : i32
    %c0_i32_0 = arith.constant 0 : i32
    %c0_i32_1 = arith.constant 0 : i32
    return %c0_i32, %c0_i32_0 : i32, i32
  }
  func.func @transform_4(%arg0: i32, %arg1: memref<2x8xi32, #tpu.memory_space<smem>>) -> (i32, i32) {
    %c0_i32 = arith.constant 0 : i32
    %c0_i32_0 = arith.constant 0 : i32
    %c0_i32_1 = arith.constant 0 : i32
    return %c0_i32, %c0_i32_0 : i32, i32
  }
  func.func @transform_5(%arg0: i32, %arg1: memref<2x8xi32, #tpu.memory_space<smem>>) -> (i32, i32) {
    %c0_i32 = arith.constant 0 : i32
    %c0_i32_0 = arith.constant 0 : i32
    %c0_i32_1 = arith.constant 0 : i32
    return %c0_i32, %c0_i32_0 : i32, i32
  }
  func.func @transform_6(%arg0: i32, %arg1: memref<2x8xi32, #tpu.memory_space<smem>>) -> (i32, i32, i32) {
    %c0_i32 = arith.constant 0 : i32
    %c0_i32_0 = arith.constant 0 : i32
    %c0_i32_1 = arith.constant 0 : i32
    return %arg0, %c0_i32, %c0_i32_0 : i32, i32, i32
  }
}

</mosaic_0001>

<llo_original>
// kernel: tpu_custom_call.1
$region0: #{tpu_custom_call.1}
  #allocation0 [shape = 'u32[]', space=smem, size = 0x4, offset = 0x4, fixed_abs, tag = 'smem constant byte address 0x4 - core index']
  #allocation1 [shape = 'u32[144,128]{1,0:T(1,128)}', space=vmem, size = 0x12000, scoped, tag = 'internal scratch']
  #allocation2 [shape = 'f32[14,32]{1,0:T(8,128)}', space=vmem, size = 0x2000, scoped, tag = 'scratch operand']
  #allocation3 [shape = 's32[8]{0}', space=sflag, size = 0x20, scoped, tag = 'scratch operand']
  #allocation4 [shape = 's32[1]{0}', space=sflag, size = 0x4, scoped, tag = 'scoped memory for tpu_custom_call.1']
  #allocation5 [shape = 'u8[1024]{0}', space=smem, size = 0x400, scoped, tag = 'prefetched SMEM operand 0']
  #allocation6 [shape = 's32[]', space=sflag, size = 0x4, offset = 0, fixed_abs, tag = 'sflag constant byte address 0x0 - dummy sync flag']
  #allocation7 [shape = 's32[]', space=sflag, size = 0x4, offset = 0, fixed_abs, tag = 'sflag constant byte address 0x0 - dummy sync flag']
  #allocation8 [shape = 's32[]', space=sflag, size = 0x4, offset = 0, fixed_abs, tag = 'sflag constant byte address 0x0 - dummy sync flag']
  #allocation9 [shape = 's32[]', space=sflag, size = 0x4, offset = 0, fixed_abs, tag = 'sflag constant byte address 0x0 - dummy sync flag']
  #allocation10 [shape = 's32[]', space=sflag, size = 0x4, offset = 0, fixed_abs, tag = 'sflag constant byte address 0x0 - dummy sync flag']
  #allocation11 [shape = 's32[]', space=sflag, size = 0x4, offset = 0, fixed_abs, tag = 'sflag constant byte address 0x0 - dummy sync flag']
  #allocation12 [shape = 's32[]', space=sflag, size = 0x4, offset = 0, fixed_abs, tag = 'sflag constant byte address 0x0 - dummy sync flag']
  #allocation13 [shape = 's32[]', space=sflag, size = 0x4, offset = 0, fixed_abs, tag = 'sflag constant byte address 0x0 - dummy sync flag']
  %s0 = inlined_call_operand.vmem [shape: s32[2,8], index: 0, kind: input, shape index: {}]
  %s1 = inlined_call_operand.vmem [shape: f32[2,2,48], index: 1, kind: input, shape index: {}]
  %s2 = inlined_call_operand.vmem [shape: f32[64,32], index: 2, kind: input, shape index: {}]
  %s3 = inlined_call_operand.vmem [shape: f32[2,32], index: 3, kind: input, shape index: {}]
  %s4 = inlined_call_operand.vmem [shape: f32[48,32], index: 4, kind: input, shape index: {}]
  %s5 = inlined_call_operand.vmem [shape: f32[1,32], index: 5, kind: input, shape index: {}]
  %s6 = inlined_call_operand.vmem [shape: f32[14,32], index: 6, kind: input, shape index: {}]
  %s7 = inlined_call_operand.vmem [shape: f32[2,14,32], index: 7, kind: output, shape index: {}]
  %s8 = sld [smem:[#allocation0]]
  $region293: #{tpu_custom_call.1} parent=0
    _
  %s10 = ssub.s32 1, %s8
  %s11 = scalar_select 0, %s10, %s8
  %s12 = sshll.u32 %s0, 4
  %s13 = int_to_ptr.vmem [resolvable:$true] %s12
  %15 = dma.vmem_to_smem %s13, 32, [#allocation5], [#allocation4]
  %16 = dma.done [#allocation4], 32
  %17 = sfence
  loop: start=0, step=1, limit=4
  $region2: #{tpu_custom_call.1} parent=0 // loop_pre_header
    _
  $region3: #{tpu_custom_call.1} parent=0 // loop_header
    %s19 = sphi 0, %s23
    %p20 = scmp.ge.s32.totalorder %s19, 4
    %s29 = sphi 0, %s31
    %s32 = sphi 0, %s29
    %s33 = sphi 0, %s32
    %s49 = sphi 0, %s33
    %s53 = sphi 0, %s53
    %s55 = sphi 0, %s53
    %s56 = sphi 0, %s55
    %s70 = sphi 0, %s56
    %s74 = sphi 0, %s74
    %s76 = sphi 0, %s74
    %s77 = sphi 0, %s76
    %s91 = sphi 0, %s77
    %s95 = sphi 0, %s95
    %s97 = sphi 0, %s95
    %s98 = sphi 0, %s97
    %s112 = sphi 0, %s98
    %s116 = sphi 0, %s116
    %s118 = sphi 0, %s116
    %s119 = sphi 0, %s118
    %s133 = sphi 0, %s119
    %s139 = sphi 0, %s141
    %s142 = sphi 0, %s139
    %s143 = sphi 0, %s142
    %s159 = sphi 0, %s143
  $region4: #{tpu_custom_call.1} parent=0 // loop_header_branch
    %22 = sbr.rel (%p20) target = $region8
  $region5: #{tpu_custom_call.1} parent=0 // loop_body
    %s24 = ssub.s32 %s19, 1
    %s25 = ssub.s32 %s19, 2
    %s26 = sadd.s32 %s19, 1
    %s27 = ssub.s32 %s19, %s26
    %p28 = scmp.eq.s32.totalorder %s27, 0
    %s30 = sadd.s32 %s29, 1
    %s31 = scalar_select %p28, %s29, %s30
    %p34 = pneg %p28
    %p35 = scmp.eq.s32.totalorder %s19, 1
    %p36 = por %p34, %p35
    %p37 = scmp.ne.s32.totalorder %s29, %s32
    %p38 = scmp.eq.s32.totalorder %s19, 0
    %p39 = por %p37, %p38
    %p40 = scmp.ne.s32.totalorder %s29, %s32
    %p41 = scmp.eq.s32.totalorder %s24, 1
    %p42 = por %p40, %p41
    %p43 = scmp.ne.s32.totalorder %s32, %s33
    %p44 = scmp.eq.s32.totalorder %s24, 0
    %p45 = por %p43, %p44
    %p46 = scmp.ne.s32.totalorder %s32, %s33
    %p47 = scmp.eq.s32.totalorder %s25, 1
    %p48 = por %p46, %p47
    %p50 = scmp.ne.s32.totalorder %s33, %s49
    %p51 = scmp.eq.s32.totalorder %s25, 0
    %p52 = por %p50, %p51
    %s54 = sadd.s32 %s53, 1
    %p57 = scmp.eq.s32.totalorder %s19, 1
    %p58 = scmp.ne.s32.totalorder %s53, %s55
    %p59 = scmp.eq.s32.totalorder %s19, 0
    %p60 = por %p58, %p59
    %p61 = scmp.ne.s32.totalorder %s53, %s55
    %p62 = scmp.eq.s32.totalorder %s24, 1
    %p63 = por %p61, %p62
    %p64 = scmp.ne.s32.totalorder %s55, %s56
    %p65 = scmp.eq.s32.totalorder %s24, 0
    %p66 = por %p64, %p65
    %p67 = scmp.ne.s32.totalorder %s55, %s56
    %p68 = scmp.eq.s32.totalorder %s25, 1
    %p69 = por %p67, %p68
    %p71 = scmp.ne.s32.totalorder %s56, %s70
    %p72 = scmp.eq.s32.totalorder %s25, 0
    %p73 = por %p71, %p72
    %s75 = sadd.s32 %s74, 1
    %p78 = scmp.eq.s32.totalorder %s19, 1
    %p79 = scmp.ne.s32.totalorder %s74, %s76
    %p80 = scmp.eq.s32.totalorder %s19, 0
    %p81 = por %p79, %p80
    %p82 = scmp.ne.s32.totalorder %s74, %s76
    %p83 = scmp.eq.s32.totalorder %s24, 1
    %p84 = por %p82, %p83
    %p85 = scmp.ne.s32.totalorder %s76, %s77
    %p86 = scmp.eq.s32.totalorder %s24, 0
    %p87 = por %p85, %p86
    %p88 = scmp.ne.s32.totalorder %s76, %s77
    %p89 = scmp.eq.s32.totalorder %s25, 1
    %p90 = por %p88, %p89
    %p92 = scmp.ne.s32.totalorder %s77, %s91
    %p93 = scmp.eq.s32.totalorder %s25, 0
    %p94 = por %p92, %p93
    %s96 = sadd.s32 %s95, 1
    %p99 = scmp.eq.s32.totalorder %s19, 1
    %p100 = scmp.ne.s32.totalorder %s95, %s97
    %p101 = scmp.eq.s32.totalorder %s19, 0
    %p102 = por %p100, %p101
    %p103 = scmp.ne.s32.totalorder %s95, %s97
    %p104 = scmp.eq.s32.totalorder %s24, 1
    %p105 = por %p103, %p104
    %p106 = scmp.ne.s32.totalorder %s97, %s98
    %p107 = scmp.eq.s32.totalorder %s24, 0
    %p108 = por %p106, %p107
    %p109 = scmp.ne.s32.totalorder %s97, %s98
    %p110 = scmp.eq.s32.totalorder %s25, 1
    %p111 = por %p109, %p110
    %p113 = scmp.ne.s32.totalorder %s98, %s112
    %p114 = scmp.eq.s32.totalorder %s25, 0
    %p115 = por %p113, %p114
    %s117 = sadd.s32 %s116, 1
    %p120 = scmp.eq.s32.totalorder %s19, 1
    %p121 = scmp.ne.s32.totalorder %s116, %s118
    %p122 = scmp.eq.s32.totalorder %s19, 0
    %p123 = por %p121, %p122
    %p124 = scmp.ne.s32.totalorder %s116, %s118
    %p125 = scmp.eq.s32.totalorder %s24, 1
    %p126 = por %p124, %p125
    %p127 = scmp.ne.s32.totalorder %s118, %s119
    %p128 = scmp.eq.s32.totalorder %s24, 0
    %p129 = por %p127, %p128
    %p130 = scmp.ne.s32.totalorder %s118, %s119
    %p131 = scmp.eq.s32.totalorder %s25, 1
    %p132 = por %p130, %p131
    %p134 = scmp.ne.s32.totalorder %s119, %s133
    %p135 = scmp.eq.s32.totalorder %s25, 0
    %p136 = por %p134, %p135
    %s137 = ssub.s32 %s19, %s26
    %p138 = scmp.eq.s32.totalorder %s137, 0
    %s140 = sadd.s32 %s139, 1
    %s141 = scalar_select %p138, %s139, %s140
    %p144 = pneg %p138
    %p145 = scmp.eq.s32.totalorder %s19, 1
    %p146 = por %p144, %p145
    %p147 = scmp.ne.s32.totalorder %s139, %s142
    %p148 = scmp.eq.s32.totalorder %s19, 0
    %p149 = por %p147, %p148
    %p150 = scmp.ne.s32.totalorder %s139, %s142
    %p151 = scmp.eq.s32.totalorder %s24, 1
    %p152 = por %p150, %p151
    %p153 = scmp.ne.s32.totalorder %s142, %s143
    %p154 = scmp.eq.s32.totalorder %s24, 0
    %p155 = por %p153, %p154
    %p156 = scmp.ne.s32.totalorder %s142, %s143
    %p157 = scmp.eq.s32.totalorder %s25, 1
    %p158 = por %p156, %p157
    %p160 = scmp.ne.s32.totalorder %s143, %s159
    %p161 = scmp.eq.s32.totalorder %s25, 0
    %p162 = por %p160, %p161
    %p163 = scmp.le.s32.totalorder 1, %s19
    %p164 = scmp.lt.s32.totalorder %s19, 3
    %p165 = pnand %p163, %p164
    %p166 = pneg %p165
    // Predicated region
    $region9: #{tpu_custom_call.1} parent=5 // pred_check
      _
    $region10: #{tpu_custom_call.1} parent=5 // pred_check_branch
      %168 = sbr.rel (%p165) target = $region12
    $region11: #{tpu_custom_call.1} parent=5 // pred_region
      %s169 = ssub.s32 %s19, 1
      // Predicated region
      $region13: #{tpu_custom_call.1} parent=11 // pred_check
        %p170 = pneg %p66
      $region14: #{tpu_custom_call.1} parent=11 // pred_check_branch
        %172 = sbr.rel (%p170) target = $region16
      $region15: #{tpu_custom_call.1} parent=11 // pred_region
        _
      $region16: #{tpu_custom_call.1} parent=11 // pred_fallthru
        _
      // Predicated region
      $region17: #{tpu_custom_call.1} parent=11 // pred_check
        %p173 = pneg %p87
      $region18: #{tpu_custom_call.1} parent=11 // pred_check_branch
        %175 = sbr.rel (%p173) target = $region20
      $region19: #{tpu_custom_call.1} parent=11 // pred_region
        _
      $region20: #{tpu_custom_call.1} parent=11 // pred_fallthru
        _
      // Predicated region
      $region21: #{tpu_custom_call.1} parent=11 // pred_check
        %p176 = pneg %p108
      $region22: #{tpu_custom_call.1} parent=11 // pred_check_branch
        %178 = sbr.rel (%p176) target = $region24
      $region23: #{tpu_custom_call.1} parent=11 // pred_region
        _
      $region24: #{tpu_custom_call.1} parent=11 // pred_fallthru
        _
      // Predicated region
      $region25: #{tpu_custom_call.1} parent=11 // pred_check
        %p179 = pneg %p129
      $region26: #{tpu_custom_call.1} parent=11 // pred_check_branch
        %181 = sbr.rel (%p179) target = $region28
      $region27: #{tpu_custom_call.1} parent=11 // pred_region
        _
      $region28: #{tpu_custom_call.1} parent=11 // pred_fallthru
        _
    $region12: #{tpu_custom_call.1} parent=5 // pred_fallthru
      _
    %p182 = scmp.lt.s32.totalorder %s19, 2
    // Predicated region
    $region29: #{tpu_custom_call.1} parent=5 // pred_check
      %p183 = pneg %p182
    $region30: #{tpu_custom_call.1} parent=5 // pred_check_branch
      %185 = sbr.rel (%p183) target = $region32
    $region31: #{tpu_custom_call.1} parent=5 // pred_region
      // Predicated region
      $region33: #{tpu_custom_call.1} parent=31 // pred_check
        %p186 = pneg %p39
      $region34: #{tpu_custom_call.1} parent=31 // pred_check_branch
        %188 = sbr.rel (%p186) target = $region36
      $region35: #{tpu_custom_call.1} parent=31 // pred_region
        %p189 = scmp.lt.s32.totalorder %s19, 1
        %s190 = scalar_select %p189, %s19, 1
        %s191 = smul.addr %s190, 2
        %s192 = scalar_lea.vmem %s1, %s191
      $region36: #{tpu_custom_call.1} parent=31 // pred_fallthru
        _
    $region32: #{tpu_custom_call.1} parent=5 // pred_fallthru
      _
    %p193 = scmp.le.s32.totalorder 1, %s19
    %p194 = scmp.lt.s32.totalorder %s19, 3
    %p195 = pnand %p193, %p194
    %p196 = pneg %p195
    // Predicated region
    $region37: #{tpu_custom_call.1} parent=5 // pred_check
      _
    $region38: #{tpu_custom_call.1} parent=5 // pred_check_branch
      %198 = sbr.rel (%p195) target = $region40
    $region39: #{tpu_custom_call.1} parent=5 // pred_region
      %s199 = ssub.s32 %s19, 1
      %p200 = scmp.lt.s32.totalorder %s24, 1
      %s201 = scalar_select %p200, %s24, 1
      %s202 = smul.addr %s201, 2
      %s203 = scalar_lea.vmem %s1, %s202
      %p204 = pneg %p45
      %p205 = pneg %p42
      %p206 = pneg %p66
      %p207 = pneg %p63
      %p208 = pneg %p87
      %p209 = pneg %p84
      %p210 = pneg %p108
      %p211 = pneg %p105
      %p212 = pneg %p129
      %p213 = pneg %p126
      %p214 = pneg %p155
      %p215 = pneg %p152
      %p216 = scmp.lt.s32.totalorder %s24, 1
      %s217 = scalar_select %p216, %s24, 1
      %s218 = smul.addr %s217, 2
      %s219 = smul.addr %s218, 8
      %s220 = scalar_lea.vmem %s7, %s219
      %p221 = scmp.lt.s32.totalorder %s24, 1
      %s222 = scalar_select %p221, %s24, 1
      %s223 = smul.addr %s222, 2
      %s224 = scalar_lea.vmem %s1, %s223
      %p225 = scmp.lt.s32.totalorder %s24, 1
      %s226 = scalar_select %p225, %s24, 1
      %s227 = smul.addr %s226, 2
      %s228 = smul.addr %s227, 8
      %s229 = scalar_lea.vmem %s7, %s228
      %s230 = smul.u32 %s24, 128
      %s231 = sld [smem:[#allocation5 + %s230]]
      %s232 = scalar_lea.vmem %s2, %s231
      %p234 = scmp.lt.u32.totalorder 1, 8
      %p235 = pneg %p234
      // Predicated region
      $region41: #{tpu_custom_call.1} parent=39 // pred_check
        _
      $region42: #{tpu_custom_call.1} parent=39 // pred_check_branch
        %237 = sbr.rel (%p234) target = $region44
      $region43: #{tpu_custom_call.1} parent=39 // pred_region
        %s252 = sand.u32 1, 7
        %p253 = scmp.eq.s32.totalorder %s252, 0
        %p254 = pneg %p253
        // Predicated region
        $region56: #{tpu_custom_call.1} parent=43 // pred_check
          _
        $region57: #{tpu_custom_call.1} parent=43 // pred_check_branch
          %256 = sbr.rel (%p253) target = $region59
        $region58: #{tpu_custom_call.1} parent=43 // pred_region
          %s257 = sand.u32 1, 7
          %s258 = ssub.s32 1, %s257
          %s259 = scalar_lea.vmem %s232, %s258
          %s260 = ssub.s32 1, %s257
          %s261 = scalar_lea.vmem [#allocation2], %s260
          %s262 = sshllo.u32 0, %s257
          loop: start=0, step=1, limit=1
          $region60: #{tpu_custom_call.1} parent=58 // loop_pre_header
            _
          $region61: #{tpu_custom_call.1} parent=58 // loop_header
            %s264 = sphi 0, %s268
            %p265 = scmp.ge.s32.totalorder %s264, 1
            %s269 = sphi %s259, %s259
            %s270 = sphi %s261, %s261
          $region62: #{tpu_custom_call.1} parent=58 // loop_header_branch
            %267 = sbr.rel (%p265) target = $region66
          $region63: #{tpu_custom_call.1} parent=58 // loop_body
            %v271 = vld [vmem:[%s269] sm:%s262]
            %272 = vst [vmem:[%s270] sm:%s262] %v271
          $region64: #{tpu_custom_call.1} parent=58 // loop_footer
            %s268 = sadd.s32 1, %s264
          $region65: #{tpu_custom_call.1} parent=58 // loop_footer_branch
            %263 = sbr.rel target = $region61
          $region66: #{tpu_custom_call.1} parent=58 // loop_exit
            _
        $region59: #{tpu_custom_call.1} parent=43 // pred_fallthru
          _
      $region44: #{tpu_custom_call.1} parent=39 // pred_fallthru
        _
      // Predicated region
      $region45: #{tpu_custom_call.1} parent=39 // pred_check
        %p238 = pneg %p234
      $region46: #{tpu_custom_call.1} parent=39 // pred_check_branch
        %240 = sbr.rel (%p238) target = $region48
      $region47: #{tpu_custom_call.1} parent=39 // pred_region
        %s241 = sshllo.u32 0, 1
        loop: start=0, step=1, limit=1
        $region49: #{tpu_custom_call.1} parent=47 // loop_pre_header
          _
        $region50: #{tpu_custom_call.1} parent=47 // loop_header
          %s243 = sphi 0, %s247
          %p244 = scmp.ge.s32.totalorder %s243, 1
          %s248 = sphi %s232, %s232
          %s249 = sphi [#allocation2], [#allocation2]
        $region51: #{tpu_custom_call.1} parent=47 // loop_header_branch
          %246 = sbr.rel (%p244) target = $region55
        $region52: #{tpu_custom_call.1} parent=47 // loop_body
          %v250 = vld [vmem:[%s248] sm:%s241]
          %251 = vst [vmem:[%s249] sm:%s241] %v250
        $region53: #{tpu_custom_call.1} parent=47 // loop_footer
          %s247 = sadd.s32 1, %s243
        $region54: #{tpu_custom_call.1} parent=47 // loop_footer_branch
          %242 = sbr.rel target = $region50
        $region55: #{tpu_custom_call.1} parent=47 // loop_exit
          _
      $region48: #{tpu_custom_call.1} parent=39 // pred_fallthru
        _
      // Predicated region
      $region67: #{tpu_custom_call.1} parent=39 // pred_check
        _
      $region68: #{tpu_custom_call.1} parent=39 // pred_check_branch
        %275 = sbr.rel (0) target = $region70
      $region69: #{tpu_custom_call.1} parent=39 // pred_region
        %276 = vsyncadd [#allocation3], 16
      $region70: #{tpu_custom_call.1} parent=39 // pred_fallthru
        _
      %s277 = sadd.s32 %s230, 1
      %s278 = sld [smem:[#allocation5 + %s277]]
      %s279 = scalar_lea.vmem %s2, %s278
      %s280 = scalar_lea.vmem [#allocation2], 1
      %s281 = scalar_lea.sflag [#allocation3], 1
      %p283 = scmp.lt.u32.totalorder 1, 8
      %p284 = pneg %p283
      // Predicated region
      $region71: #{tpu_custom_call.1} parent=39 // pred_check
        _
      $region72: #{tpu_custom_call.1} parent=39 // pred_check_branch
        %286 = sbr.rel (%p283) target = $region74
      $region73: #{tpu_custom_call.1} parent=39 // pred_region
        %s301 = sand.u32 1, 7
        %p302 = scmp.eq.s32.totalorder %s301, 0
        %p303 = pneg %p302
        // Predicated region
        $region86: #{tpu_custom_call.1} parent=73 // pred_check
          _
        $region87: #{tpu_custom_call.1} parent=73 // pred_check_branch
          %305 = sbr.rel (%p302) target = $region89
        $region88: #{tpu_custom_call.1} parent=73 // pred_region
          %s306 = sand.u32 1, 7
          %s307 = ssub.s32 1, %s306
          %s308 = scalar_lea.vmem %s279, %s307
          %s309 = ssub.s32 1, %s306
          %s310 = scalar_lea.vmem %s280, %s309 [#allocation2]
          %s311 = sshllo.u32 0, %s306
          loop: start=0, step=1, limit=1
          $region90: #{tpu_custom_call.1} parent=88 // loop_pre_header
            _
          $region91: #{tpu_custom_call.1} parent=88 // loop_header
            %s313 = sphi 0, %s317
            %p314 = scmp.ge.s32.totalorder %s313, 1
            %s318 = sphi %s308, %s308
            %s319 = sphi %s310, %s310
          $region92: #{tpu_custom_call.1} parent=88 // loop_header_branch
            %316 = sbr.rel (%p314) target = $region96
          $region93: #{tpu_custom_call.1} parent=88 // loop_body
            %v320 = vld [vmem:[%s318] sm:%s311]
            %321 = vst [vmem:[%s319] sm:%s311] %v320
          $region94: #{tpu_custom_call.1} parent=88 // loop_footer
            %s317 = sadd.s32 1, %s313
          $region95: #{tpu_custom_call.1} parent=88 // loop_footer_branch
            %312 = sbr.rel target = $region91
          $region96: #{tpu_custom_call.1} parent=88 // loop_exit
            _
        $region89: #{tpu_custom_call.1} parent=73 // pred_fallthru
          _
      $region74: #{tpu_custom_call.1} parent=39 // pred_fallthru
        _
      // Predicated region
      $region75: #{tpu_custom_call.1} parent=39 // pred_check
        %p287 = pneg %p283
      $region76: #{tpu_custom_call.1} parent=39 // pred_check_branch
        %289 = sbr.rel (%p287) target = $region78
      $region77: #{tpu_custom_call.1} parent=39 // pred_region
        %s290 = sshllo.u32 0, 1
        loop: start=0, step=1, limit=1
        $region79: #{tpu_custom_call.1} parent=77 // loop_pre_header
          _
        $region80: #{tpu_custom_call.1} parent=77 // loop_header
          %s292 = sphi 0, %s296
          %p293 = scmp.ge.s32.totalorder %s292, 1
          %s297 = sphi %s279, %s279
          %s298 = sphi %s280, %s280
        $region81: #{tpu_custom_call.1} parent=77 // loop_header_branch
          %295 = sbr.rel (%p293) target = $region85
        $region82: #{tpu_custom_call.1} parent=77 // loop_body
          %v299 = vld [vmem:[%s297] sm:%s290]
          %300 = vst [vmem:[%s298] sm:%s290] %v299
        $region83: #{tpu_custom_call.1} parent=77 // loop_footer
          %s296 = sadd.s32 1, %s292
        $region84: #{tpu_custom_call.1} parent=77 // loop_footer_branch
          %291 = sbr.rel target = $region80
        $region85: #{tpu_custom_call.1} parent=77 // loop_exit
          _
      $region78: #{tpu_custom_call.1} parent=39 // pred_fallthru
        _
      // Predicated region
      $region97: #{tpu_custom_call.1} parent=39 // pred_check
        _
      $region98: #{tpu_custom_call.1} parent=39 // pred_check_branch
        %324 = sbr.rel (0) target = $region100
      $region99: #{tpu_custom_call.1} parent=39 // pred_region
        %325 = vsyncadd %s281, 16
      $region100: #{tpu_custom_call.1} parent=39 // pred_fallthru
        _
      %s326 = sadd.s32 %s230, 2
      %s327 = sld [smem:[#allocation5 + %s326]]
      %s328 = scalar_lea.vmem %s2, %s327
      %s329 = scalar_lea.vmem [#allocation2], 2
      %s330 = scalar_lea.sflag [#allocation3], 2
      %p332 = scmp.lt.u32.totalorder 1, 8
      %p333 = pneg %p332
      // Predicated region
      $region101: #{tpu_custom_call.1} parent=39 // pred_check
        _
      $region102: #{tpu_custom_call.1} parent=39 // pred_check_branch
        %335 = sbr.rel (%p332) target = $region104
      $region103: #{tpu_custom_call.1} parent=39 // pred_region
        %s350 = sand.u32 1, 7
        %p351 = scmp.eq.s32.totalorder %s350, 0
        %p352 = pneg %p351
        // Predicated region
        $region116: #{tpu_custom_call.1} parent=103 // pred_check
          _
        $region117: #{tpu_custom_call.1} parent=103 // pred_check_branch
          %354 = sbr.rel (%p351) target = $region119
        $region118: #{tpu_custom_call.1} parent=103 // pred_region
          %s355 = sand.u32 1, 7
          %s356 = ssub.s32 1, %s355
          %s357 = scalar_lea.vmem %s328, %s356
          %s358 = ssub.s32 1, %s355
          %s359 = scalar_lea.vmem %s329, %s358 [#allocation2]
          %s360 = sshllo.u32 0, %s355
          loop: start=0, step=1, limit=1
          $region120: #{tpu_custom_call.1} parent=118 // loop_pre_header
            _
          $region121: #{tpu_custom_call.1} parent=118 // loop_header
            %s362 = sphi 0, %s366
            %p363 = scmp.ge.s32.totalorder %s362, 1
            %s367 = sphi %s357, %s357
            %s368 = sphi %s359, %s359
          $region122: #{tpu_custom_call.1} parent=118 // loop_header_branch
            %365 = sbr.rel (%p363) target = $region126
          $region123: #{tpu_custom_call.1} parent=118 // loop_body
            %v369 = vld [vmem:[%s367] sm:%s360]
            %370 = vst [vmem:[%s368] sm:%s360] %v369
          $region124: #{tpu_custom_call.1} parent=118 // loop_footer
            %s366 = sadd.s32 1, %s362
          $region125: #{tpu_custom_call.1} parent=118 // loop_footer_branch
            %361 = sbr.rel target = $region121
          $region126: #{tpu_custom_call.1} parent=118 // loop_exit
            _
        $region119: #{tpu_custom_call.1} parent=103 // pred_fallthru
          _
      $region104: #{tpu_custom_call.1} parent=39 // pred_fallthru
        _
      // Predicated region
      $region105: #{tpu_custom_call.1} parent=39 // pred_check
        %p336 = pneg %p332
      $region106: #{tpu_custom_call.1} parent=39 // pred_check_branch
        %338 = sbr.rel (%p336) target = $region108
      $region107: #{tpu_custom_call.1} parent=39 // pred_region
        %s339 = sshllo.u32 0, 1
        loop: start=0, step=1, limit=1
        $region109: #{tpu_custom_call.1} parent=107 // loop_pre_header
          _
        $region110: #{tpu_custom_call.1} parent=107 // loop_header
          %s341 = sphi 0, %s345
          %p342 = scmp.ge.s32.totalorder %s341, 1
          %s346 = sphi %s328, %s328
          %s347 = sphi %s329, %s329
        $region111: #{tpu_custom_call.1} parent=107 // loop_header_branch
          %344 = sbr.rel (%p342) target = $region115
        $region112: #{tpu_custom_call.1} parent=107 // loop_body
          %v348 = vld [vmem:[%s346] sm:%s339]
          %349 = vst [vmem:[%s347] sm:%s339] %v348
        $region113: #{tpu_custom_call.1} parent=107 // loop_footer
          %s345 = sadd.s32 1, %s341
        $region114: #{tpu_custom_call.1} parent=107 // loop_footer_branch
          %340 = sbr.rel target = $region110
        $region115: #{tpu_custom_call.1} parent=107 // loop_exit
          _
      $region108: #{tpu_custom_call.1} parent=39 // pred_fallthru
        _
      // Predicated region
      $region127: #{tpu_custom_call.1} parent=39 // pred_check
        _
      $region128: #{tpu_custom_call.1} parent=39 // pred_check_branch
        %373 = sbr.rel (0) target = $region130
      $region129: #{tpu_custom_call.1} parent=39 // pred_region
        %374 = vsyncadd %s330, 16
      $region130: #{tpu_custom_call.1} parent=39 // pred_fallthru
        _
      %s375 = sadd.s32 %s230, 3
      %s376 = sld [smem:[#allocation5 + %s375]]
      %s377 = scalar_lea.vmem %s2, %s376
      %s378 = scalar_lea.vmem [#allocation2], 3
      %s379 = scalar_lea.sflag [#allocation3], 3
      %p381 = scmp.lt.u32.totalorder 1, 8
      %p382 = pneg %p381
      // Predicated region
      $region131: #{tpu_custom_call.1} parent=39 // pred_check
        _
      $region132: #{tpu_custom_call.1} parent=39 // pred_check_branch
        %384 = sbr.rel (%p381) target = $region134
      $region133: #{tpu_custom_call.1} parent=39 // pred_region
        %s399 = sand.u32 1, 7
        %p400 = scmp.eq.s32.totalorder %s399, 0
        %p401 = pneg %p400
        // Predicated region
        $region146: #{tpu_custom_call.1} parent=133 // pred_check
          _
        $region147: #{tpu_custom_call.1} parent=133 // pred_check_branch
          %403 = sbr.rel (%p400) target = $region149
        $region148: #{tpu_custom_call.1} parent=133 // pred_region
          %s404 = sand.u32 1, 7
          %s405 = ssub.s32 1, %s404
          %s406 = scalar_lea.vmem %s377, %s405
          %s407 = ssub.s32 1, %s404
          %s408 = scalar_lea.vmem %s378, %s407 [#allocation2]
          %s409 = sshllo.u32 0, %s404
          loop: start=0, step=1, limit=1
          $region150: #{tpu_custom_call.1} parent=148 // loop_pre_header
            _
          $region151: #{tpu_custom_call.1} parent=148 // loop_header
            %s411 = sphi 0, %s415
            %p412 = scmp.ge.s32.totalorder %s411, 1
            %s416 = sphi %s406, %s406
            %s417 = sphi %s408, %s408
          $region152: #{tpu_custom_call.1} parent=148 // loop_header_branch
            %414 = sbr.rel (%p412) target = $region156
          $region153: #{tpu_custom_call.1} parent=148 // loop_body
            %v418 = vld [vmem:[%s416] sm:%s409]
            %419 = vst [vmem:[%s417] sm:%s409] %v418
          $region154: #{tpu_custom_call.1} parent=148 // loop_footer
            %s415 = sadd.s32 1, %s411
          $region155: #{tpu_custom_call.1} parent=148 // loop_footer_branch
            %410 = sbr.rel target = $region151
          $region156: #{tpu_custom_call.1} parent=148 // loop_exit
            _
        $region149: #{tpu_custom_call.1} parent=133 // pred_fallthru
          _
      $region134: #{tpu_custom_call.1} parent=39 // pred_fallthru
        _
      // Predicated region
      $region135: #{tpu_custom_call.1} parent=39 // pred_check
        %p385 = pneg %p381
      $region136: #{tpu_custom_call.1} parent=39 // pred_check_branch
        %387 = sbr.rel (%p385) target = $region138
      $region137: #{tpu_custom_call.1} parent=39 // pred_region
        %s388 = sshllo.u32 0, 1
        loop: start=0, step=1, limit=1
        $region139: #{tpu_custom_call.1} parent=137 // loop_pre_header
          _
        $region140: #{tpu_custom_call.1} parent=137 // loop_header
          %s390 = sphi 0, %s394
          %p391 = scmp.ge.s32.totalorder %s390, 1
          %s395 = sphi %s377, %s377
          %s396 = sphi %s378, %s378
        $region141: #{tpu_custom_call.1} parent=137 // loop_header_branch
          %393 = sbr.rel (%p391) target = $region145
        $region142: #{tpu_custom_call.1} parent=137 // loop_body
          %v397 = vld [vmem:[%s395] sm:%s388]
          %398 = vst [vmem:[%s396] sm:%s388] %v397
        $region143: #{tpu_custom_call.1} parent=137 // loop_footer
          %s394 = sadd.s32 1, %s390
        $region144: #{tpu_custom_call.1} parent=137 // loop_footer_branch
          %389 = sbr.rel target = $region140
        $region145: #{tpu_custom_call.1} parent=137 // loop_exit
          _
      $region138: #{tpu_custom_call.1} parent=39 // pred_fallthru
        _
      // Predicated region
      $region157: #{tpu_custom_call.1} parent=39 // pred_check
        _
      $region158: #{tpu_custom_call.1} parent=39 // pred_check_branch
        %422 = sbr.rel (0) target = $region160
      $region159: #{tpu_custom_call.1} parent=39 // pred_region
        %423 = vsyncadd %s379, 16
      $region160: #{tpu_custom_call.1} parent=39 // pred_fallthru
        _
      %s424 = sadd.s32 %s230, 4
      %s425 = sld [smem:[#allocation5 + %s424]]
      %s426 = scalar_lea.vmem %s2, %s425
      %s427 = scalar_lea.vmem [#allocation2], 4
      %s428 = scalar_lea.sflag [#allocation3], 4
      %p430 = scmp.lt.u32.totalorder 1, 8
      %p431 = pneg %p430
      // Predicated region
      $region161: #{tpu_custom_call.1} parent=39 // pred_check
        _
      $region162: #{tpu_custom_call.1} parent=39 // pred_check_branch
        %433 = sbr.rel (%p430) target = $region164
      $region163: #{tpu_custom_call.1} parent=39 // pred_region
        %s448 = sand.u32 1, 7
        %p449 = scmp.eq.s32.totalorder %s448, 0
        %p450 = pneg %p449
        // Predicated region
        $region176: #{tpu_custom_call.1} parent=163 // pred_check
          _
        $region177: #{tpu_custom_call.1} parent=163 // pred_check_branch
          %452 = sbr.rel (%p449) target = $region179
        $region178: #{tpu_custom_call.1} parent=163 // pred_region
          %s453 = sand.u32 1, 7
          %s454 = ssub.s32 1, %s453
          %s455 = scalar_lea.vmem %s426, %s454
          %s456 = ssub.s32 1, %s453
          %s457 = scalar_lea.vmem %s427, %s456 [#allocation2]
          %s458 = sshllo.u32 0, %s453
          loop: start=0, step=1, limit=1
          $region180: #{tpu_custom_call.1} parent=178 // loop_pre_header
            _
          $region181: #{tpu_custom_call.1} parent=178 // loop_header
            %s460 = sphi 0, %s464
            %p461 = scmp.ge.s32.totalorder %s460, 1
            %s465 = sphi %s455, %s455
            %s466 = sphi %s457, %s457
          $region182: #{tpu_custom_call.1} parent=178 // loop_header_branch
            %463 = sbr.rel (%p461) target = $region186
          $region183: #{tpu_custom_call.1} parent=178 // loop_body
            %v467 = vld [vmem:[%s465] sm:%s458]
            %468 = vst [vmem:[%s466] sm:%s458] %v467
          $region184: #{tpu_custom_call.1} parent=178 // loop_footer
            %s464 = sadd.s32 1, %s460
          $region185: #{tpu_custom_call.1} parent=178 // loop_footer_branch
            %459 = sbr.rel target = $region181
          $region186: #{tpu_custom_call.1} parent=178 // loop_exit
            _
        $region179: #{tpu_custom_call.1} parent=163 // pred_fallthru
          _
      $region164: #{tpu_custom_call.1} parent=39 // pred_fallthru
        _
      // Predicated region
      $region165: #{tpu_custom_call.1} parent=39 // pred_check
        %p434 = pneg %p430
      $region166: #{tpu_custom_call.1} parent=39 // pred_check_branch
        %436 = sbr.rel (%p434) target = $region168
      $region167: #{tpu_custom_call.1} parent=39 // pred_region
        %s437 = sshllo.u32 0, 1
        loop: start=0, step=1, limit=1
        $region169: #{tpu_custom_call.1} parent=167 // loop_pre_header
          _
        $region170: #{tpu_custom_call.1} parent=167 // loop_header
          %s439 = sphi 0, %s443
          %p440 = scmp.ge.s32.totalorder %s439, 1
          %s444 = sphi %s426, %s426
          %s445 = sphi %s427, %s427
        $region171: #{tpu_custom_call.1} parent=167 // loop_header_branch
          %442 = sbr.rel (%p440) target = $region175
        $region172: #{tpu_custom_call.1} parent=167 // loop_body
          %v446 = vld [vmem:[%s444] sm:%s437]
          %447 = vst [vmem:[%s445] sm:%s437] %v446
        $region173: #{tpu_custom_call.1} parent=167 // loop_footer
          %s443 = sadd.s32 1, %s439
        $region174: #{tpu_custom_call.1} parent=167 // loop_footer_branch
          %438 = sbr.rel target = $region170
        $region175: #{tpu_custom_call.1} parent=167 // loop_exit
          _
      $region168: #{tpu_custom_call.1} parent=39 // pred_fallthru
        _
      // Predicated region
      $region187: #{tpu_custom_call.1} parent=39 // pred_check
        _
      $region188: #{tpu_custom_call.1} parent=39 // pred_check_branch
        %471 = sbr.rel (0) target = $region190
      $region189: #{tpu_custom_call.1} parent=39 // pred_region
        %472 = vsyncadd %s428, 16
      $region190: #{tpu_custom_call.1} parent=39 // pred_fallthru
        _
      %s473 = sadd.s32 %s230, 5
      %s474 = sld [smem:[#allocation5 + %s473]]
      %s475 = scalar_lea.vmem %s2, %s474
      %s476 = scalar_lea.vmem [#allocation2], 5
      %s477 = scalar_lea.sflag [#allocation3], 5
      %p479 = scmp.lt.u32.totalorder 1, 8
      %p480 = pneg %p479
      // Predicated region
      $region191: #{tpu_custom_call.1} parent=39 // pred_check
        _
      $region192: #{tpu_custom_call.1} parent=39 // pred_check_branch
        %482 = sbr.rel (%p479) target = $region194
      $region193: #{tpu_custom_call.1} parent=39 // pred_region
        %s497 = sand.u32 1, 7
        %p498 = scmp.eq.s32.totalorder %s497, 0
        %p499 = pneg %p498
        // Predicated region
        $region206: #{tpu_custom_call.1} parent=193 // pred_check
          _
        $region207: #{tpu_custom_call.1} parent=193 // pred_check_branch
          %501 = sbr.rel (%p498) target = $region209
        $region208: #{tpu_custom_call.1} parent=193 // pred_region
          %s502 = sand.u32 1, 7
          %s503 = ssub.s32 1, %s502
          %s504 = scalar_lea.vmem %s475, %s503
          %s505 = ssub.s32 1, %s502
          %s506 = scalar_lea.vmem %s476, %s505 [#allocation2]
          %s507 = sshllo.u32 0, %s502
          loop: start=0, step=1, limit=1
          $region210: #{tpu_custom_call.1} parent=208 // loop_pre_header
            _
          $region211: #{tpu_custom_call.1} parent=208 // loop_header
            %s509 = sphi 0, %s513
            %p510 = scmp.ge.s32.totalorder %s509, 1
            %s514 = sphi %s504, %s504
            %s515 = sphi %s506, %s506
          $region212: #{tpu_custom_call.1} parent=208 // loop_header_branch
            %512 = sbr.rel (%p510) target = $region216
          $region213: #{tpu_custom_call.1} parent=208 // loop_body
            %v516 = vld [vmem:[%s514] sm:%s507]
            %517 = vst [vmem:[%s515] sm:%s507] %v516
          $region214: #{tpu_custom_call.1} parent=208 // loop_footer
            %s513 = sadd.s32 1, %s509
          $region215: #{tpu_custom_call.1} parent=208 // loop_footer_branch
            %508 = sbr.rel target = $region211
          $region216: #{tpu_custom_call.1} parent=208 // loop_exit
            _
        $region209: #{tpu_custom_call.1} parent=193 // pred_fallthru
          _
      $region194: #{tpu_custom_call.1} parent=39 // pred_fallthru
        _
      // Predicated region
      $region195: #{tpu_custom_call.1} parent=39 // pred_check
        %p483 = pneg %p479
      $region196: #{tpu_custom_call.1} parent=39 // pred_check_branch
        %485 = sbr.rel (%p483) target = $region198
      $region197: #{tpu_custom_call.1} parent=39 // pred_region
        %s486 = sshllo.u32 0, 1
        loop: start=0, step=1, limit=1
        $region199: #{tpu_custom_call.1} parent=197 // loop_pre_header
          _
        $region200: #{tpu_custom_call.1} parent=197 // loop_header
          %s488 = sphi 0, %s492
          %p489 = scmp.ge.s32.totalorder %s488, 1
          %s493 = sphi %s475, %s475
          %s494 = sphi %s476, %s476
        $region201: #{tpu_custom_call.1} parent=197 // loop_header_branch
          %491 = sbr.rel (%p489) target = $region205
        $region202: #{tpu_custom_call.1} parent=197 // loop_body
          %v495 = vld [vmem:[%s493] sm:%s486]
          %496 = vst [vmem:[%s494] sm:%s486] %v495
        $region203: #{tpu_custom_call.1} parent=197 // loop_footer
          %s492 = sadd.s32 1, %s488
        $region204: #{tpu_custom_call.1} parent=197 // loop_footer_branch
          %487 = sbr.rel target = $region200
        $region205: #{tpu_custom_call.1} parent=197 // loop_exit
          _
      $region198: #{tpu_custom_call.1} parent=39 // pred_fallthru
        _
      // Predicated region
      $region217: #{tpu_custom_call.1} parent=39 // pred_check
        _
      $region218: #{tpu_custom_call.1} parent=39 // pred_check_branch
        %520 = sbr.rel (0) target = $region220
      $region219: #{tpu_custom_call.1} parent=39 // pred_region
        %521 = vsyncadd %s477, 16
      $region220: #{tpu_custom_call.1} parent=39 // pred_fallthru
        _
      %s522 = sadd.s32 %s230, 6
      %s523 = sld [smem:[#allocation5 + %s522]]
      %s524 = scalar_lea.vmem %s2, %s523
      %s525 = scalar_lea.vmem [#allocation2], 6
      %s526 = scalar_lea.sflag [#allocation3], 6
      %p528 = scmp.lt.u32.totalorder 1, 8
      %p529 = pneg %p528
      // Predicated region
      $region221: #{tpu_custom_call.1} parent=39 // pred_check
        _
      $region222: #{tpu_custom_call.1} parent=39 // pred_check_branch
        %531 = sbr.rel (%p528) target = $region224
      $region223: #{tpu_custom_call.1} parent=39 // pred_region
        %s546 = sand.u32 1, 7
        %p547 = scmp.eq.s32.totalorder %s546, 0
        %p548 = pneg %p547
        // Predicated region
        $region236: #{tpu_custom_call.1} parent=223 // pred_check
          _
        $region237: #{tpu_custom_call.1} parent=223 // pred_check_branch
          %550 = sbr.rel (%p547) target = $region239
        $region238: #{tpu_custom_call.1} parent=223 // pred_region
          %s551 = sand.u32 1, 7
          %s552 = ssub.s32 1, %s551
          %s553 = scalar_lea.vmem %s524, %s552
          %s554 = ssub.s32 1, %s551
          %s555 = scalar_lea.vmem %s525, %s554 [#allocation2]
          %s556 = sshllo.u32 0, %s551
          loop: start=0, step=1, limit=1
          $region240: #{tpu_custom_call.1} parent=238 // loop_pre_header
            _
          $region241: #{tpu_custom_call.1} parent=238 // loop_header
            %s558 = sphi 0, %s562
            %p559 = scmp.ge.s32.totalorder %s558, 1
            %s563 = sphi %s553, %s553
            %s564 = sphi %s555, %s555
          $region242: #{tpu_custom_call.1} parent=238 // loop_header_branch
            %561 = sbr.rel (%p559) target = $region246
          $region243: #{tpu_custom_call.1} parent=238 // loop_body
            %v565 = vld [vmem:[%s563] sm:%s556]
            %566 = vst [vmem:[%s564] sm:%s556] %v565
          $region244: #{tpu_custom_call.1} parent=238 // loop_footer
            %s562 = sadd.s32 1, %s558
          $region245: #{tpu_custom_call.1} parent=238 // loop_footer_branch
            %557 = sbr.rel target = $region241
          $region246: #{tpu_custom_call.1} parent=238 // loop_exit
            _
        $region239: #{tpu_custom_call.1} parent=223 // pred_fallthru
          _
      $region224: #{tpu_custom_call.1} parent=39 // pred_fallthru
        _
      // Predicated region
      $region225: #{tpu_custom_call.1} parent=39 // pred_check
        %p532 = pneg %p528
      $region226: #{tpu_custom_call.1} parent=39 // pred_check_branch
        %534 = sbr.rel (%p532) target = $region228
      $region227: #{tpu_custom_call.1} parent=39 // pred_region
        %s535 = sshllo.u32 0, 1
        loop: start=0, step=1, limit=1
        $region229: #{tpu_custom_call.1} parent=227 // loop_pre_header
          _
        $region230: #{tpu_custom_call.1} parent=227 // loop_header
          %s537 = sphi 0, %s541
          %p538 = scmp.ge.s32.totalorder %s537, 1
          %s542 = sphi %s524, %s524
          %s543 = sphi %s525, %s525
        $region231: #{tpu_custom_call.1} parent=227 // loop_header_branch
          %540 = sbr.rel (%p538) target = $region235
        $region232: #{tpu_custom_call.1} parent=227 // loop_body
          %v544 = vld [vmem:[%s542] sm:%s535]
          %545 = vst [vmem:[%s543] sm:%s535] %v544
        $region233: #{tpu_custom_call.1} parent=227 // loop_footer
          %s541 = sadd.s32 1, %s537
        $region234: #{tpu_custom_call.1} parent=227 // loop_footer_branch
          %536 = sbr.rel target = $region230
        $region235: #{tpu_custom_call.1} parent=227 // loop_exit
          _
      $region228: #{tpu_custom_call.1} parent=39 // pred_fallthru
        _
      // Predicated region
      $region247: #{tpu_custom_call.1} parent=39 // pred_check
        _
      $region248: #{tpu_custom_call.1} parent=39 // pred_check_branch
        %569 = sbr.rel (0) target = $region250
      $region249: #{tpu_custom_call.1} parent=39 // pred_region
        %570 = vsyncadd %s526, 16
      $region250: #{tpu_custom_call.1} parent=39 // pred_fallthru
        _
      %s571 = sadd.s32 %s230, 7
      %s572 = sld [smem:[#allocation5 + %s571]]
      %s573 = scalar_lea.vmem %s2, %s572
      %s574 = scalar_lea.vmem [#allocation2], 7
      %s575 = scalar_lea.sflag [#allocation3], 7
      %p577 = scmp.lt.u32.totalorder 1, 8
      %p578 = pneg %p577
      // Predicated region
      $region251: #{tpu_custom_call.1} parent=39 // pred_check
        _
      $region252: #{tpu_custom_call.1} parent=39 // pred_check_branch
        %580 = sbr.rel (%p577) target = $region254
      $region253: #{tpu_custom_call.1} parent=39 // pred_region
        %s595 = sand.u32 1, 7
        %p596 = scmp.eq.s32.totalorder %s595, 0
        %p597 = pneg %p596
        // Predicated region
        $region266: #{tpu_custom_call.1} parent=253 // pred_check
          _
        $region267: #{tpu_custom_call.1} parent=253 // pred_check_branch
          %599 = sbr.rel (%p596) target = $region269
        $region268: #{tpu_custom_call.1} parent=253 // pred_region
          %s600 = sand.u32 1, 7
          %s601 = ssub.s32 1, %s600
          %s602 = scalar_lea.vmem %s573, %s601
          %s603 = ssub.s32 1, %s600
          %s604 = scalar_lea.vmem %s574, %s603 [#allocation2]
          %s605 = sshllo.u32 0, %s600
          loop: start=0, step=1, limit=1
          $region270: #{tpu_custom_call.1} parent=268 // loop_pre_header
            _
          $region271: #{tpu_custom_call.1} parent=268 // loop_header
            %s607 = sphi 0, %s611
            %p608 = scmp.ge.s32.totalorder %s607, 1
            %s612 = sphi %s602, %s602
            %s613 = sphi %s604, %s604
          $region272: #{tpu_custom_call.1} parent=268 // loop_header_branch
            %610 = sbr.rel (%p608) target = $region276
          $region273: #{tpu_custom_call.1} parent=268 // loop_body
            %v614 = vld [vmem:[%s612] sm:%s605]
            %615 = vst [vmem:[%s613] sm:%s605] %v614
          $region274: #{tpu_custom_call.1} parent=268 // loop_footer
            %s611 = sadd.s32 1, %s607
          $region275: #{tpu_custom_call.1} parent=268 // loop_footer_branch
            %606 = sbr.rel target = $region271
          $region276: #{tpu_custom_call.1} parent=268 // loop_exit
            _
        $region269: #{tpu_custom_call.1} parent=253 // pred_fallthru
          _
      $region254: #{tpu_custom_call.1} parent=39 // pred_fallthru
        _
      // Predicated region
      $region255: #{tpu_custom_call.1} parent=39 // pred_check
        %p581 = pneg %p577
      $region256: #{tpu_custom_call.1} parent=39 // pred_check_branch
        %583 = sbr.rel (%p581) target = $region258
      $region257: #{tpu_custom_call.1} parent=39 // pred_region
        %s584 = sshllo.u32 0, 1
        loop: start=0, step=1, limit=1
        $region259: #{tpu_custom_call.1} parent=257 // loop_pre_header
          _
        $region260: #{tpu_custom_call.1} parent=257 // loop_header
          %s586 = sphi 0, %s590
          %p587 = scmp.ge.s32.totalorder %s586, 1
          %s591 = sphi %s573, %s573
          %s592 = sphi %s574, %s574
        $region261: #{tpu_custom_call.1} parent=257 // loop_header_branch
          %589 = sbr.rel (%p587) target = $region265
        $region262: #{tpu_custom_call.1} parent=257 // loop_body
          %v593 = vld [vmem:[%s591] sm:%s584]
          %594 = vst [vmem:[%s592] sm:%s584] %v593
        $region263: #{tpu_custom_call.1} parent=257 // loop_footer
          %s590 = sadd.s32 1, %s586
        $region264: #{tpu_custom_call.1} parent=257 // loop_footer_branch
          %585 = sbr.rel target = $region260
        $region265: #{tpu_custom_call.1} parent=257 // loop_exit
          _
      $region258: #{tpu_custom_call.1} parent=39 // pred_fallthru
        _
      // Predicated region
      $region277: #{tpu_custom_call.1} parent=39 // pred_check
        _
      $region278: #{tpu_custom_call.1} parent=39 // pred_check_branch
        %618 = sbr.rel (0) target = $region280
      $region279: #{tpu_custom_call.1} parent=39 // pred_region
        %619 = vsyncadd %s575, 16
      $region280: #{tpu_custom_call.1} parent=39 // pred_fallthru
        _
      %v620 = vld [vmem:[%s224] sm:$0x3]
      %v621 = vld [vmem:[%s4] sm:$0xff]
      %v622 = vld [vmem:[%s4 + $0x8] sm:$0xff]
      %v623 = vld [vmem:[%s4 + $0x10] sm:$0xff]
      %v624 = vld [vmem:[%s4 + $0x18] sm:$0xff]
      %v625 = vld [vmem:[%s4 + $0x20] sm:$0xff]
      %v626 = vld [vmem:[%s4 + $0x28] sm:$0xff]
      %v627 = vld [vmem:[%s5] sm:$0x1]
      %v629 = vlaneseq
      %v630 = vshrl.u32 %v629, 7
      %v631 = vsub.s32 0, %v630
      %v632 = vrot.slane %v627, %v631
      %vm634 = vcmask 392192
      %v636 = vsel %vm634, %v620, 0
      %638 = vmatprep.subr.mxu0 0.0
      %639 = vmatpush1.msra.mxu0 %v621
      %640 = vmatprep.subr.mxu0 0.0
      %641 = vmatpush1.msra.mxu0 %v622
      %642 = vmatprep.subr.mxu0 0.0
      %643 = vmatpush1.msra.mxu0 %v623
      %644 = vmatprep.subr.mxu0 0.0
      %645 = vmatpush1.msra.mxu0 %v624
      %646 = vmatprep.subr.mxu0 0.0
      %647 = vmatpush1.msra.mxu0 %v625
      %648 = vmatprep.subr.mxu0 0.0
      %649 = vmatpush1.msra.mxu0 %v626
      %650 = vmatprep.subr.mxu0 0.0
      %651 = vmatpush1.msra.mxu0 0.0
      %652 = vmatprep.subr.mxu0 0.0
      %653 = vmatpush1.msra.mxu0 0.0
      %654 = vmatprep.subr.mxu0 0.0
      %655 = vmatpush1.msra.mxu0 0.0
      %656 = vmatprep.subr.mxu0 0.0
      %657 = vmatpush1.msra.mxu0 0.0
      %658 = vmatprep.subr.mxu0 0.0
      %659 = vmatpush1.msra.mxu0 0.0
      %660 = vmatprep.subr.mxu0 0.0
      %661 = vmatpush1.msra.mxu0 0.0
      %662 = vmatprep.subr.mxu0 0.0
      %663 = vmatpush1.msra.mxu0 0.0
      %664 = vmatprep.subr.mxu0 0.0
      %665 = vmatpush1.msra.mxu0 0.0
      %666 = vmatprep.subr.mxu0 0.0
      %667 = vmatpush1.msra.mxu0 0.0
      %668 = vmatprep.subr.mxu0 0.0
      %669 = vmatpush1.msra.mxu0 0.0
      %670 = vmatprep.subr.mxu0 0.0
      %671 = vmatpush1.msra.mxu0 0.0
      %672 = vmatprep.subr.mxu0 0.0
      %673 = vmatpush1.msra.mxu0 0.0
      %674 = vmatprep.subr.mxu0 0.0
      %675 = vmatpush1.msra.mxu0 0.0
      %676 = vmatprep.subr.mxu0 0.0
      %677 = vmatpush1.msra.mxu0 0.0
      %678 = vmatprep.subr.mxu0 0.0
      %679 = vmatpush1.msra.mxu0 0.0
      %680 = vmatprep.subr.mxu0 0.0
      %681 = vmatpush1.msra.mxu0 0.0
      %682 = vmatprep.subr.mxu0 0.0
      %683 = vmatpush1.msra.mxu0 0.0
      %684 = vmatprep.subr.mxu0 0.0
      %685 = vmatpush1.msra.mxu0 0.0
      %686 = vmatprep.subr.mxu0 0.0
      %687 = vmatpush1.msra.mxu0 0.0
      %688 = vmatprep.subr.mxu0 0.0
      %689 = vmatpush1.msra.mxu0 0.0
      %690 = vmatprep.subr.mxu0 0.0
      %691 = vmatpush1.msra.mxu0 0.0
      %692 = vmatprep.subr.mxu0 0.0
      %693 = vmatpush1.msra.mxu0 0.0
      %694 = vmatprep.subr.mxu0 0.0
      %695 = vmatpush1.msra.mxu0 0.0
      %696 = vmatprep.subr.mxu0 0.0
      %697 = vmatpush1.msra.mxu0 0.0
      %698 = vmatprep.subr.mxu0 0.0
      %699 = vmatpush1.msra.mxu0 0.0
      %700 = vmatprep.subr.mxu0 0.0
      %701 = vmatpush1.msra.mxu0 0.0
      %702 = vmatprep.mubr.f32.mxu0 0.0
      %703 = vmatmul.mubr.f32.gmra.mrb[0].mxu0 %v636
      %v704 = vpop.f32.mrb[0].mxu0
      %v705 = vadd.f32 %v632, %v704
      %v706 = vpop.f32.mrb[0].mxu0
      %707 = vdwg.mxu0
      %v708 = vld [vmem:[%s3] sm:$0x1]
      %vm709 = vcmask 253952
      %710 = vst.msk [vmem:[#allocation2 + $0x8] sm:$0x1] %vm709, %v708
      %711 = vst.msk [vmem:[#allocation2 + $0x9] sm:$0x1] %vm709, %v705
      %v712 = vld [vmem:[%s3 + $0x1] sm:$0x1]
      %713 = vst.msk [vmem:[#allocation2 + $0xa] sm:$0x1] %vm709, %v712
      %v714 = vld [vmem:[%s3] sm:$0x1]
      %715 = vst.msk [vmem:[#allocation2 + $0xb] sm:$0x1] %vm709, %v714
      %vm716 = vcmask 254977
      %717 = vst.msk [vmem:[#allocation2 + $0xb] sm:$0x2] %vm716, %v705
      %v718 = vld [vmem:[%s3 + $0x1] sm:$0x1]
      %719 = vst.msk [vmem:[#allocation2 + $0xd] sm:$0x1] %vm709, %v718
      %721 = dma.done [#allocation3], 16
      %723 = dma.done %s281, 16
      %725 = dma.done %s330, 16
      %727 = dma.done %s379, 16
      %729 = dma.done %s428, 16
      %731 = dma.done %s477, 16
      %733 = dma.done %s526, 16
      %735 = dma.done %s575, 16
      %v736 = vld [vmem:[#allocation2] sm:$0xff]
      %v737 = vld [vmem:[#allocation2 + $0x8] sm:$0x3f]
      %v738 = vld [vmem:[%s6] sm:$0xff]
      %v739 = vld [vmem:[%s6 + $0x8] sm:$0x3f]
      %v740 = vadd.f32 %v736, %v738
      %v741 = vadd.f32 %v737, %v739
      %vm742 = vcmask 261120
      %743 = vst.msk [vmem:[%s229] sm:$0xff] %vm742, %v740
      %vm744 = vcmask 259072
      %745 = vst.msk [vmem:[%s229 + $0x8] sm:$0x3f] %vm744, %v741
      %p746 = scmp.lt.s32.totalorder %s24, 1
      %s747 = scalar_select %p746, %s24, 1
      %s748 = smul.addr %s747, 2
      %s749 = smul.addr %s748, 8
      %s750 = scalar_lea.vmem %s7, %s749
      // Predicated region
      $region281: #{tpu_custom_call.1} parent=39 // pred_check
        %p751 = pneg %p152
      $region282: #{tpu_custom_call.1} parent=39 // pred_check_branch
        %753 = sbr.rel (%p751) target = $region284
      $region283: #{tpu_custom_call.1} parent=39 // pred_region
        _
      $region284: #{tpu_custom_call.1} parent=39 // pred_fallthru
        _
    $region40: #{tpu_custom_call.1} parent=5 // pred_fallthru
      _
    %p754 = scmp.le.s32.totalorder 2, %s19
    // Predicated region
    $region285: #{tpu_custom_call.1} parent=5 // pred_check
      %p755 = pneg %p754
    $region286: #{tpu_custom_call.1} parent=5 // pred_check_branch
      %757 = sbr.rel (%p755) target = $region288
    $region287: #{tpu_custom_call.1} parent=5 // pred_region
      %s758 = ssub.s32 %s19, 2
      // Predicated region
      $region289: #{tpu_custom_call.1} parent=287 // pred_check
        %p759 = pneg %p158
      $region290: #{tpu_custom_call.1} parent=287 // pred_check_branch
        %761 = sbr.rel (%p759) target = $region292
      $region291: #{tpu_custom_call.1} parent=287 // pred_region
        %p762 = scmp.lt.s32.totalorder %s25, 1
        %s763 = scalar_select %p762, %s25, 1
        %s764 = smul.addr %s763, 2
        %s765 = smul.addr %s764, 8
        %s766 = scalar_lea.vmem %s7, %s765
      $region292: #{tpu_custom_call.1} parent=287 // pred_fallthru
        _
    $region288: #{tpu_custom_call.1} parent=5 // pred_fallthru
      _
  $region6: #{tpu_custom_call.1} parent=0 // loop_footer
    %s23 = sadd.s32 1, %s19
  $region7: #{tpu_custom_call.1} parent=0 // loop_footer_branch
    %18 = sbr.rel target = $region3
  $region8: #{tpu_custom_call.1} parent=0 // loop_exit
    _
  %767 = vsyncmov [#allocation3]
  %s768 = vpop.sfrf %767
  %p769 = scmp.eq.s32.totalorder %s768, 0
  %p770 = pneg %p769
  %772 = shalt.err (%p770)
  %s773 = scalar_lea.sflag [#allocation3], 1
  %774 = vsyncmov %s773
  %s775 = vpop.sfrf %774
  %p776 = scmp.eq.s32.totalorder %s775, 0
  %p777 = pneg %p776
  %779 = shalt.err (%p777)
  %s780 = scalar_lea.sflag [#allocation3], 2
  %781 = vsyncmov %s780
  %s782 = vpop.sfrf %781
  %p783 = scmp.eq.s32.totalorder %s782, 0
  %p784 = pneg %p783
  %786 = shalt.err (%p784)
  %s787 = scalar_lea.sflag [#allocation3], 3
  %788 = vsyncmov %s787
  %s789 = vpop.sfrf %788
  %p790 = scmp.eq.s32.totalorder %s789, 0
  %p791 = pneg %p790
  %793 = shalt.err (%p791)
  %s794 = scalar_lea.sflag [#allocation3], 4
  %795 = vsyncmov %s794
  %s796 = vpop.sfrf %795
  %p797 = scmp.eq.s32.totalorder %s796, 0
  %p798 = pneg %p797
  %800 = shalt.err (%p798)
  %s801 = scalar_lea.sflag [#allocation3], 5
  %802 = vsyncmov %s801
  %s803 = vpop.sfrf %802
  %p804 = scmp.eq.s32.totalorder %s803, 0
  %p805 = pneg %p804
  %807 = shalt.err (%p805)
  %s808 = scalar_lea.sflag [#allocation3], 6
  %809 = vsyncmov %s808
  %s810 = vpop.sfrf %809
  %p811 = scmp.eq.s32.totalorder %s810, 0
  %p812 = pneg %p811
  %814 = shalt.err (%p812)
  %s815 = scalar_lea.sflag [#allocation3], 7
  %816 = vsyncmov %s815
  %s817 = vpop.sfrf %816
  %p818 = scmp.eq.s32.totalorder %s817, 0
  %p819 = pneg %p818
  %821 = shalt.err (%p819)

</llo_original>
